<compile_context>
chip_gen: v7x
topology: tpu7x:2x2x1
jax: 0.10.0
libtpu: 0.0.40
codegen_flags: <defaults>
</compile_context>

<pallas_src>
import functools

import jax
import jax.numpy as jnp
from jax import lax
from jax.experimental import pallas as pl
from jax.experimental.pallas import tpu as pltpu

INPUT_DIM = 7       # len(features)
HIDDEN_DIM = 64
FC1_DIM = 32
OUTPUT_DIM = 2      # len(target_cols)
OUT_PAD = 128       # lane-dense output block width

T_CHUNK_MAX = 32    # time-chunk cap: bounds the streamed xg tile independent of T
TB_MAX = 128        # batch tile cap


def _round_up(n, m):
    return ((n + m - 1) // m) * m


def _lstm_mlp_kernel(xg_ref,    # (T_CHUNK, TB, 4H) bf16  precomputed x@W_ih + b, time-major
                     whh_ref,   # (H, 4H)   bf16   W_hh^T
                     w1_ref,    # (H, 32)   f32    fc1 weight^T
                     b1_ref,    # (1, 32)   f32
                     w2_ref,    # (32, 128) f32    fc2 weight^T, zero-padded lanes
                     b2_ref,    # (1, 128)  f32
                     out_ref,   # (TB, 128) f32
                     h_scr,     # (TB, H)   f32  carried across time chunks
                     c_scr,     # (TB, H)   f32
                     *, t_chunk, t_total, unroll):
    H = whh_ref.shape[0]
    t_blk = pl.program_id(1)

    @pl.when(t_blk == 0)
    def _():
        h_scr[...] = jnp.zeros_like(h_scr)
        c_scr[...] = jnp.zeros_like(c_scr)

    whh = whh_ref[...]                        # hoist weight load out of the serial loop
    needs_mask = (t_total % t_chunk) != 0     # static: last chunk has zero-padded steps

    def step(t, carry):
        h, c = carry
        # Only the bf16 x bf16 -> f32 recurrent matmul is on the serial critical path.
        gates = xg_ref[t].astype(jnp.float32) + jnp.dot(
            h.astype(jnp.bfloat16), whh, preferred_element_type=jnp.float32)
        # PyTorch gate order: input, forget, cell(g), output.
        # One sigmoid over the lane-aligned [i|f] pair (lanes 0:128).
        sig_if = jax.nn.sigmoid(gates[:, 0:2 * H])
        i_g = sig_if[:, 0:H]
        f_g = sig_if[:, H:2 * H]
        g_g = jnp.tanh(gates[:, 2 * H:3 * H])
        o_g = jax.nn.sigmoid(gates[:, 3 * H:4 * H])
        c_new = f_g * c + i_g * g_g
        h_new = o_g * jnp.tanh(c_new)
        if needs_mask:
            valid = (t_blk * t_chunk + t) < t_total
            h_new = jnp.where(valid, h_new, h)
            c_new = jnp.where(valid, c_new, c)
        return h_new, c_new

    h, c = lax.fori_loop(0, t_chunk, step, (h_scr[...], c_scr[...]),
                         unroll=unroll)
    h_scr[...] = h
    c_scr[...] = c

    # MLP head only after the last time chunk (output block stays VMEM-resident).
    @pl.when(t_blk == pl.num_programs(1) - 1)
    def _():
        hid = jnp.dot(h, w1_ref[...], preferred_element_type=jnp.float32) + b1_ref[...]
        hid = jnp.maximum(hid, 0.0)
        out = jnp.dot(hid, w2_ref[...], preferred_element_type=jnp.float32) + b2_ref[...]
        out_ref[...] = out.astype(out_ref.dtype)


@jax.jit
def lstm_model_forward(x, params):
    """x: (B, T, D) float32. Returns (B, OUTPUT_DIM) float32."""
    B, T, D = x.shape
    H = HIDDEN_DIM

    # Hoisted input projection: one XLA GEMM, emitted directly in bf16 and in
    # the time-major (T, B, 4H) layout the kernel streams.
    xg = (jnp.einsum("btd,dg->tbg", x, params["w_ih_t"])
          + params["b_gates"]).astype(jnp.bfloat16)

    # Batch tile: multiple of 16 sublanes (bf16 packing), sized so the batch
    # grid gets >= 2 steps when possible (v7x megacore).
    TB = min(TB_MAX, _round_up(pl.cdiv(B, 2), 16))
    B_pad = _round_up(B, TB)

    # Time chunk: bounds the double-buffered xg tile (<= 32*128*256*2B = 2 MiB
    # at TB=128) independent of T — fits every chip's default scoped VMEM.
    t_chunk = min(T, T_CHUNK_MAX)
    T_pad = _round_up(T, t_chunk)
    n_chunks = T_pad // t_chunk

    if B_pad != B or T_pad != T:
        xg = jnp.pad(xg, ((0, T_pad - T), (0, B_pad - B), (0, 0)))

    # Full unroll only for short chunks; otherwise bounded to limit vreg spills.
    unroll = t_chunk if t_chunk <= 16 else 4

    kernel = functools.partial(
        _lstm_mlp_kernel, t_chunk=t_chunk, t_total=T, unroll=unroll)

    out = pl.pallas_call(
        kernel,
        out_shape=jax.ShapeDtypeStruct((B_pad, OUT_PAD), jnp.float32),
        grid=(B_pad // TB, n_chunks),
        in_specs=[
            pl.BlockSpec((t_chunk, TB, 4 * H), lambda i, t: (t, i, 0)),
            pl.BlockSpec((H, 4 * H), lambda i, t: (0, 0)),
            pl.BlockSpec((H, FC1_DIM), lambda i, t: (0, 0)),
            pl.BlockSpec((1, FC1_DIM), lambda i, t: (0, 0)),
            pl.BlockSpec((FC1_DIM, OUT_PAD), lambda i, t: (0, 0)),
            pl.BlockSpec((1, OUT_PAD), lambda i, t: (0, 0)),
        ],
        out_specs=pl.BlockSpec((TB, OUT_PAD), lambda i, t: (i, 0)),
        scratch_shapes=[
            pltpu.VMEM((TB, H), jnp.float32),   # h carry
            pltpu.VMEM((TB, H), jnp.float32),   # c carry
        ],
        compiler_params=pltpu.CompilerParams(
            dimension_semantics=("parallel", "arbitrary")),
    )(
        xg,
        params["w_hh_bf16"],
        params["w1_t"], params["b1"],
        params["w2_pad"], params["b2_pad"],
    )
    # Drop padded batch rows and the zero-padded output lanes.
    return out[:B, :OUTPUT_DIM]


def init_params(key):
    """Deterministic PyTorch-style uniform init (U[-1/sqrt(fan_in), 1/sqrt(fan_in)])."""
    H, D = HIDDEN_DIM, INPUT_DIM
    ks = jax.random.split(key, 8)
    s_lstm = 1.0 / jnp.sqrt(H)
    s_fc1 = 1.0 / jnp.sqrt(H)
    s_fc2 = 1.0 / jnp.sqrt(FC1_DIM)

    w_ih = jax.random.uniform(ks[0], (4 * H, D), jnp.float32, -s_lstm, s_lstm)
    w_hh = jax.random.uniform(ks[1], (4 * H, H), jnp.float32, -s_lstm, s_lstm)
    b_ih = jax.random.uniform(ks[2], (4 * H,), jnp.float32, -s_lstm, s_lstm)
    b_hh = jax.random.uniform(ks[3], (4 * H,), jnp.float32, -s_lstm, s_lstm)
    w1 = jax.random.uniform(ks[4], (FC1_DIM, H), jnp.float32, -s_fc1, s_fc1)
    b1 = jax.random.uniform(ks[5], (FC1_DIM,), jnp.float32, -s_fc1, s_fc1)
    w2 = jax.random.uniform(ks[6], (OUTPUT_DIM, FC1_DIM), jnp.float32, -s_fc2, s_fc2)
    b2 = jax.random.uniform(ks[7], (OUTPUT_DIM,), jnp.float32, -s_fc2, s_fc2)

    w2_t = w2.T                                                     # (32, 2)
    w2_pad = jnp.zeros((FC1_DIM, OUT_PAD), jnp.float32).at[:, :OUTPUT_DIM].set(w2_t)
    b2_pad = jnp.zeros((1, OUT_PAD), jnp.float32).at[:, :OUTPUT_DIM].set(b2.reshape(1, -1))

    return {
        # kernel params
        "w_ih_t": w_ih.T,                                # (D, 4H) f32 (XLA einsum)
        "b_gates": (b_ih + b_hh).reshape(1, 4 * H),      # (1, 4H) f32
        "w_hh_bf16": w_hh.T.astype(jnp.bfloat16),        # (H, 4H) bf16
        "w1_t": w1.T,                                    # (H, 32) f32
        "b1": b1.reshape(1, FC1_DIM),
        "w2_pad": w2_pad,                                # (32, 128) lane-padded
        "b2_pad": b2_pad,                                # (1, 128)
        # f32 copies for the pure-JAX reference
        "w_hh_t": w_hh.T,
        "w2_t": w2_t,
        "b2": b2.reshape(1, OUTPUT_DIM),
    }


def reference_forward(x, params):
    """Pure-JAX f32 reference matching PyTorch LSTM semantics."""
    B, T, D = x.shape
    H = HIDDEN_DIM
    h = jnp.zeros((B, H), jnp.float32)
    c = jnp.zeros((B, H), jnp.float32)
    for t in range(T):
        g = x[:, t, :] @ params["w_ih_t"] + h @ params["w_hh_t"] + params["b_gates"]
        i = jax.nn.sigmoid(g[:, 0 * H:1 * H])
        f = jax.nn.sigmoid(g[:, 1 * H:2 * H])
        gg = jnp.tanh(g[:, 2 * H:3 * H])
        o = jax.nn.sigmoid(g[:, 3 * H:4 * H])
        c = f * c + i * gg
        h = o * jnp.tanh(c)
    hid = jnp.maximum(h @ params["w1_t"] + params["b1"], 0.0)
    return hid @ params["w2_t"] + params["b2"]


if __name__ == "__main__":
    key = jax.random.PRNGKey(0)
    k_param, k_x1, k_x2 = jax.random.split(key, 3)
    params = init_params(k_param)

    # Primary small case (B=2, T=8): single time chunk, fully unrolled.
    x1 = jax.random.normal(k_x1, (2, 8, INPUT_DIM), jnp.float32)
    out1 = jax.block_until_ready(lstm_model_forward(x1, params))
    ref1 = reference_forward(x1, params)
    assert out1.shape == (2, OUTPUT_DIM)
    assert jnp.allclose(out1, ref1, atol=2e-2, rtol=2e-2), (out1, ref1)

    # Secondary case (B=5, T=48): exercises time-chunking (2 chunks), the
    # padded-tail step masking, batch padding and the bounded unroll path.
    x2 = jax.random.normal(k_x2, (5, 48, INPUT_DIM), jnp.float32)
    out2 = jax.block_until_ready(lstm_model_forward(x2, params))
    ref2 = reference_forward(x2, params)
    assert out2.shape == (5, OUTPUT_DIM)
    assert jnp.allclose(out2, ref2, atol=2e-2, rtol=2e-2), (out2, ref2)

    print("KERNEL_OK")
</pallas_src>

<mosaic_0001>
module attributes {stable_mosaic.version = 11 : i64} {
  func.func @_lstm_mlp_kernel(%arg0: i32, %arg1: i32, %arg2: memref<8x16x256xbf16, #tpu.memory_space<vmem>>, %arg3: memref<64x256xbf16, #tpu.memory_space<vmem>>, %arg4: memref<64x32xf32, #tpu.memory_space<vmem>>, %arg5: memref<1x32xf32, #tpu.memory_space<vmem>>, %arg6: memref<32x128xf32, #tpu.memory_space<vmem>>, %arg7: memref<1x128xf32, #tpu.memory_space<vmem>>, %arg8: memref<16x128xf32, #tpu.memory_space<vmem>>, %arg9: memref<16x64xf32, #tpu.memory_space<vmem>>, %arg10: memref<16x64xf32, #tpu.memory_space<vmem>>) attributes {dimension_semantics = [#tpu.dimension_semantics<parallel>, #tpu.dimension_semantics<arbitrary>], iteration_bounds = array<i64: 1, 1>, scalar_prefetch = 0 : i64, scratch_operands = 2 : i64, tpu.core_type = #tpu.core_type<tc>, window_params = [{transform_indices = @transform_0, window_bounds = array<i64: 8, 16, 256>}, {pipeline_mode = #tpu.pipeline_mode<synchronous>, transform_indices = @transform_1, window_bounds = array<i64: 64, 256>}, {pipeline_mode = #tpu.pipeline_mode<synchronous>, transform_indices = @transform_2, window_bounds = array<i64: 64, 32>}, {pipeline_mode = #tpu.pipeline_mode<synchronous>, transform_indices = @transform_3, window_bounds = array<i64: 1, 32>}, {pipeline_mode = #tpu.pipeline_mode<synchronous>, transform_indices = @transform_4, window_bounds = array<i64: 32, 128>}, {pipeline_mode = #tpu.pipeline_mode<synchronous>, transform_indices = @transform_5, window_bounds = array<i64: 1, 128>}, {transform_indices = @transform_6, window_bounds = array<i64: 16, 128>}]} {
    %c0_i32 = arith.constant 0 : i32
    %0 = arith.cmpi eq, %arg1, %c0_i32 : i32
    %1 = arith.extui %0 : i1 to i32
    %c0_i32_0 = arith.constant 0 : i32
    %2 = arith.cmpi ne, %1, %c0_i32_0 : i32
    scf.if %2 {
      %cst_52 = arith.constant 0.000000e+00 : f32
      %235 = vector.broadcast %cst_52 : f32 to vector<16x64xf32>
      %c0_53 = arith.constant 0 : index
      %c0_54 = arith.constant 0 : index
      %236 = vector.load %arg9[%c0_53, %c0_54] : memref<16x64xf32, #tpu.memory_space<vmem>>, vector<16x64xf32>
      tpu.vector_store %arg9[%c0_53, %c0_54], %235 {strides = array<i32>} : memref<16x64xf32, #tpu.memory_space<vmem>>, vector<16x64xf32>,
      %cst_55 = arith.constant 0.000000e+00 : f32
      %237 = vector.broadcast %cst_55 : f32 to vector<16x64xf32>
      %c0_56 = arith.constant 0 : index
      %c0_57 = arith.constant 0 : index
      %238 = vector.load %arg10[%c0_56, %c0_57] : memref<16x64xf32, #tpu.memory_space<vmem>>, vector<16x64xf32>
      tpu.vector_store %arg10[%c0_56, %c0_57], %237 {strides = array<i32>} : memref<16x64xf32, #tpu.memory_space<vmem>>, vector<16x64xf32>,
    } else {
    }
    %c0 = arith.constant 0 : index
    %c0_1 = arith.constant 0 : index
    %3 = vector.load %arg3[%c0, %c0_1] : memref<64x256xbf16, #tpu.memory_space<vmem>>, vector<64x256xbf16>
    %c0_2 = arith.constant 0 : index
    %c0_3 = arith.constant 0 : index
    %4 = vector.load %arg9[%c0_2, %c0_3] : memref<16x64xf32, #tpu.memory_space<vmem>>, vector<16x64xf32>
    %c0_4 = arith.constant 0 : index
    %c0_5 = arith.constant 0 : index
    %5 = vector.load %arg10[%c0_4, %c0_5] : memref<16x64xf32, #tpu.memory_space<vmem>>, vector<16x64xf32>
    %c0_i32_6 = arith.constant 0 : i32
    %6 = arith.index_cast %c0_i32_6 : i32 to index
    %c0_7 = arith.constant 0 : index
    %c0_8 = arith.constant 0 : index
    %7 = vector.load %arg2[%6, %c0_7, %c0_8] : memref<8x16x256xbf16, #tpu.memory_space<vmem>>, vector<1x16x256xbf16>
    %8 = vector.shape_cast %7 : vector<1x16x256xbf16> to vector<16x256xbf16>
    %9 = arith.extf %8 : vector<16x256xbf16> to vector<16x256xf32>
    %10 = arith.truncf %4 : vector<16x64xf32> to vector<16x64xbf16>
    %cst = arith.constant dense<0.000000e+00> : vector<16x256xf32>
    %11 = tpu.matmul %10, %3, %cst {dimension_numbers = #tpu.dot_dimension_numbers<[1], [0], [0], [1], [0, 0, 1, 1], [], []>} : vector<16x64xbf16>, vector<64x256xbf16>, vector<16x256xf32> -> vector<16x256xf32>
    %12 = arith.addf %9, %11 : vector<16x256xf32>
    %13 = vector.extract_strided_slice %12 {offsets = [0, 0], sizes = [16, 128], strides = [1, 1]} : vector<16x256xf32> to vector<16x128xf32>
    %14 = arith.negf %13 : vector<16x128xf32>
    %15 = math.exp %14 : vector<16x128xf32>
    %cst_9 = arith.constant 1.000000e+00 : f32
    %16 = vector.broadcast %cst_9 : f32 to vector<16x128xf32>
    %17 = arith.addf %16, %15 : vector<16x128xf32>
    %18 = arith.divf %16, %17 : vector<16x128xf32>
    %19 = vector.extract_strided_slice %18 {offsets = [0, 0], sizes = [16, 64], strides = [1, 1]} : vector<16x128xf32> to vector<16x64xf32>
    %20 = vector.extract_strided_slice %18 {offsets = [0, 64], sizes = [16, 64], strides = [1, 1]} : vector<16x128xf32> to vector<16x64xf32>
    %21 = vector.extract_strided_slice %12 {offsets = [0, 128], sizes = [16, 64], strides = [1, 1]} : vector<16x256xf32> to vector<16x64xf32>
    %22 = math.tanh %21 : vector<16x64xf32>
    %23 = vector.extract_strided_slice %12 {offsets = [0, 192], sizes = [16, 64], strides = [1, 1]} : vector<16x256xf32> to vector<16x64xf32>
    %24 = arith.negf %23 : vector<16x64xf32>
    %25 = math.exp %24 : vector<16x64xf32>
    %cst_10 = arith.constant 1.000000e+00 : f32
    %26 = vector.broadcast %cst_10 : f32 to vector<16x64xf32>
    %27 = arith.addf %26, %25 : vector<16x64xf32>
    %28 = arith.divf %26, %27 : vector<16x64xf32>
    %29 = arith.mulf %20, %5 : vector<16x64xf32>
    %30 = arith.mulf %19, %22 : vector<16x64xf32>
    %31 = arith.addf %29, %30 : vector<16x64xf32>
    %32 = math.tanh %31 : vector<16x64xf32>
    %33 = arith.mulf %28, %32 : vector<16x64xf32>
    %c1_i32 = arith.constant 1 : i32
    %34 = arith.index_cast %c1_i32 : i32 to index
    %c0_11 = arith.constant 0 : index
    %c0_12 = arith.constant 0 : index
    %35 = vector.load %arg2[%34, %c0_11, %c0_12] : memref<8x16x256xbf16, #tpu.memory_space<vmem>>, vector<1x16x256xbf16>
    %36 = vector.shape_cast %35 : vector<1x16x256xbf16> to vector<16x256xbf16>
    %37 = arith.extf %36 : vector<16x256xbf16> to vector<16x256xf32>
    %38 = arith.truncf %33 : vector<16x64xf32> to vector<16x64xbf16>
    %cst_13 = arith.constant dense<0.000000e+00> : vector<16x256xf32>
    %39 = tpu.matmul %38, %3, %cst_13 {dimension_numbers = #tpu.dot_dimension_numbers<[1], [0], [0], [1], [0, 0, 1, 1], [], []>} : vector<16x64xbf16>, vector<64x256xbf16>, vector<16x256xf32> -> vector<16x256xf32>
    %40 = arith.addf %37, %39 : vector<16x256xf32>
    %41 = vector.extract_strided_slice %40 {offsets = [0, 0], sizes = [16, 128], strides = [1, 1]} : vector<16x256xf32> to vector<16x128xf32>
    %42 = arith.negf %41 : vector<16x128xf32>
    %43 = math.exp %42 : vector<16x128xf32>
    %cst_14 = arith.constant 1.000000e+00 : f32
    %44 = vector.broadcast %cst_14 : f32 to vector<16x128xf32>
    %45 = arith.addf %44, %43 : vector<16x128xf32>
    %46 = arith.divf %44, %45 : vector<16x128xf32>
    %47 = vector.extract_strided_slice %46 {offsets = [0, 0], sizes = [16, 64], strides = [1, 1]} : vector<16x128xf32> to vector<16x64xf32>
    %48 = vector.extract_strided_slice %46 {offsets = [0, 64], sizes = [16, 64], strides = [1, 1]} : vector<16x128xf32> to vector<16x64xf32>
    %49 = vector.extract_strided_slice %40 {offsets = [0, 128], sizes = [16, 64], strides = [1, 1]} : vector<16x256xf32> to vector<16x64xf32>
    %50 = math.tanh %49 : vector<16x64xf32>
    %51 = vector.extract_strided_slice %40 {offsets = [0, 192], sizes = [16, 64], strides = [1, 1]} : vector<16x256xf32> to vector<16x64xf32>
    %52 = arith.negf %51 : vector<16x64xf32>
    %53 = math.exp %52 : vector<16x64xf32>
    %cst_15 = arith.constant 1.000000e+00 : f32
    %54 = vector.broadcast %cst_15 : f32 to vector<16x64xf32>
    %55 = arith.addf %54, %53 : vector<16x64xf32>
    %56 = arith.divf %54, %55 : vector<16x64xf32>
    %57 = arith.mulf %48, %31 : vector<16x64xf32>
    %58 = arith.mulf %47, %50 : vector<16x64xf32>
    %59 = arith.addf %57, %58 : vector<16x64xf32>
    %60 = math.tanh %59 : vector<16x64xf32>
    %61 = arith.mulf %56, %60 : vector<16x64xf32>
    %c2_i32 = arith.constant 2 : i32
    %62 = arith.index_cast %c2_i32 : i32 to index
    %c0_16 = arith.constant 0 : index
    %c0_17 = arith.constant 0 : index
    %63 = vector.load %arg2[%62, %c0_16, %c0_17] : memref<8x16x256xbf16, #tpu.memory_space<vmem>>, vector<1x16x256xbf16>
    %64 = vector.shape_cast %63 : vector<1x16x256xbf16> to vector<16x256xbf16>
    %65 = arith.extf %64 : vector<16x256xbf16> to vector<16x256xf32>
    %66 = arith.truncf %61 : vector<16x64xf32> to vector<16x64xbf16>
    %cst_18 = arith.constant dense<0.000000e+00> : vector<16x256xf32>
    %67 = tpu.matmul %66, %3, %cst_18 {dimension_numbers = #tpu.dot_dimension_numbers<[1], [0], [0], [1], [0, 0, 1, 1], [], []>} : vector<16x64xbf16>, vector<64x256xbf16>, vector<16x256xf32> -> vector<16x256xf32>
    %68 = arith.addf %65, %67 : vector<16x256xf32>
    %69 = vector.extract_strided_slice %68 {offsets = [0, 0], sizes = [16, 128], strides = [1, 1]} : vector<16x256xf32> to vector<16x128xf32>
    %70 = arith.negf %69 : vector<16x128xf32>
    %71 = math.exp %70 : vector<16x128xf32>
    %cst_19 = arith.constant 1.000000e+00 : f32
    %72 = vector.broadcast %cst_19 : f32 to vector<16x128xf32>
    %73 = arith.addf %72, %71 : vector<16x128xf32>
    %74 = arith.divf %72, %73 : vector<16x128xf32>
    %75 = vector.extract_strided_slice %74 {offsets = [0, 0], sizes = [16, 64], strides = [1, 1]} : vector<16x128xf32> to vector<16x64xf32>
    %76 = vector.extract_strided_slice %74 {offsets = [0, 64], sizes = [16, 64], strides = [1, 1]} : vector<16x128xf32> to vector<16x64xf32>
    %77 = vector.extract_strided_slice %68 {offsets = [0, 128], sizes = [16, 64], strides = [1, 1]} : vector<16x256xf32> to vector<16x64xf32>
    %78 = math.tanh %77 : vector<16x64xf32>
    %79 = vector.extract_strided_slice %68 {offsets = [0, 192], sizes = [16, 64], strides = [1, 1]} : vector<16x256xf32> to vector<16x64xf32>
    %80 = arith.negf %79 : vector<16x64xf32>
    %81 = math.exp %80 : vector<16x64xf32>
    %cst_20 = arith.constant 1.000000e+00 : f32
    %82 = vector.broadcast %cst_20 : f32 to vector<16x64xf32>
    %83 = arith.addf %82, %81 : vector<16x64xf32>
    %84 = arith.divf %82, %83 : vector<16x64xf32>
    %85 = arith.mulf %76, %59 : vector<16x64xf32>
    %86 = arith.mulf %75, %78 : vector<16x64xf32>
    %87 = arith.addf %85, %86 : vector<16x64xf32>
    %88 = math.tanh %87 : vector<16x64xf32>
    %89 = arith.mulf %84, %88 : vector<16x64xf32>
    %c3_i32 = arith.constant 3 : i32
    %90 = arith.index_cast %c3_i32 : i32 to index
    %c0_21 = arith.constant 0 : index
    %c0_22 = arith.constant 0 : index
    %91 = vector.load %arg2[%90, %c0_21, %c0_22] : memref<8x16x256xbf16, #tpu.memory_space<vmem>>, vector<1x16x256xbf16>
    %92 = vector.shape_cast %91 : vector<1x16x256xbf16> to vector<16x256xbf16>
    %93 = arith.extf %92 : vector<16x256xbf16> to vector<16x256xf32>
    %94 = arith.truncf %89 : vector<16x64xf32> to vector<16x64xbf16>
    %cst_23 = arith.constant dense<0.000000e+00> : vector<16x256xf32>
    %95 = tpu.matmul %94, %3, %cst_23 {dimension_numbers = #tpu.dot_dimension_numbers<[1], [0], [0], [1], [0, 0, 1, 1], [], []>} : vector<16x64xbf16>, vector<64x256xbf16>, vector<16x256xf32> -> vector<16x256xf32>
    %96 = arith.addf %93, %95 : vector<16x256xf32>
    %97 = vector.extract_strided_slice %96 {offsets = [0, 0], sizes = [16, 128], strides = [1, 1]} : vector<16x256xf32> to vector<16x128xf32>
    %98 = arith.negf %97 : vector<16x128xf32>
    %99 = math.exp %98 : vector<16x128xf32>
    %cst_24 = arith.constant 1.000000e+00 : f32
    %100 = vector.broadcast %cst_24 : f32 to vector<16x128xf32>
    %101 = arith.addf %100, %99 : vector<16x128xf32>
    %102 = arith.divf %100, %101 : vector<16x128xf32>
    %103 = vector.extract_strided_slice %102 {offsets = [0, 0], sizes = [16, 64], strides = [1, 1]} : vector<16x128xf32> to vector<16x64xf32>
    %104 = vector.extract_strided_slice %102 {offsets = [0, 64], sizes = [16, 64], strides = [1, 1]} : vector<16x128xf32> to vector<16x64xf32>
    %105 = vector.extract_strided_slice %96 {offsets = [0, 128], sizes = [16, 64], strides = [1, 1]} : vector<16x256xf32> to vector<16x64xf32>
    %106 = math.tanh %105 : vector<16x64xf32>
    %107 = vector.extract_strided_slice %96 {offsets = [0, 192], sizes = [16, 64], strides = [1, 1]} : vector<16x256xf32> to vector<16x64xf32>
    %108 = arith.negf %107 : vector<16x64xf32>
    %109 = math.exp %108 : vector<16x64xf32>
    %cst_25 = arith.constant 1.000000e+00 : f32
    %110 = vector.broadcast %cst_25 : f32 to vector<16x64xf32>
    %111 = arith.addf %110, %109 : vector<16x64xf32>
    %112 = arith.divf %110, %111 : vector<16x64xf32>
    %113 = arith.mulf %104, %87 : vector<16x64xf32>
    %114 = arith.mulf %103, %106 : vector<16x64xf32>
    %115 = arith.addf %113, %114 : vector<16x64xf32>
    %116 = math.tanh %115 : vector<16x64xf32>
    %117 = arith.mulf %112, %116 : vector<16x64xf32>
    %c4_i32 = arith.constant 4 : i32
    %118 = arith.index_cast %c4_i32 : i32 to index
    %c0_26 = arith.constant 0 : index
    %c0_27 = arith.constant 0 : index
    %119 = vector.load %arg2[%118, %c0_26, %c0_27] : memref<8x16x256xbf16, #tpu.memory_space<vmem>>, vector<1x16x256xbf16>
    %120 = vector.shape_cast %119 : vector<1x16x256xbf16> to vector<16x256xbf16>
    %121 = arith.extf %120 : vector<16x256xbf16> to vector<16x256xf32>
    %122 = arith.truncf %117 : vector<16x64xf32> to vector<16x64xbf16>
    %cst_28 = arith.constant dense<0.000000e+00> : vector<16x256xf32>
    %123 = tpu.matmul %122, %3, %cst_28 {dimension_numbers = #tpu.dot_dimension_numbers<[1], [0], [0], [1], [0, 0, 1, 1], [], []>} : vector<16x64xbf16>, vector<64x256xbf16>, vector<16x256xf32> -> vector<16x256xf32>
    %124 = arith.addf %121, %123 : vector<16x256xf32>
    %125 = vector.extract_strided_slice %124 {offsets = [0, 0], sizes = [16, 128], strides = [1, 1]} : vector<16x256xf32> to vector<16x128xf32>
    %126 = arith.negf %125 : vector<16x128xf32>
    %127 = math.exp %126 : vector<16x128xf32>
    %cst_29 = arith.constant 1.000000e+00 : f32
    %128 = vector.broadcast %cst_29 : f32 to vector<16x128xf32>
    %129 = arith.addf %128, %127 : vector<16x128xf32>
    %130 = arith.divf %128, %129 : vector<16x128xf32>
    %131 = vector.extract_strided_slice %130 {offsets = [0, 0], sizes = [16, 64], strides = [1, 1]} : vector<16x128xf32> to vector<16x64xf32>
    %132 = vector.extract_strided_slice %130 {offsets = [0, 64], sizes = [16, 64], strides = [1, 1]} : vector<16x128xf32> to vector<16x64xf32>
    %133 = vector.extract_strided_slice %124 {offsets = [0, 128], sizes = [16, 64], strides = [1, 1]} : vector<16x256xf32> to vector<16x64xf32>
    %134 = math.tanh %133 : vector<16x64xf32>
    %135 = vector.extract_strided_slice %124 {offsets = [0, 192], sizes = [16, 64], strides = [1, 1]} : vector<16x256xf32> to vector<16x64xf32>
    %136 = arith.negf %135 : vector<16x64xf32>
    %137 = math.exp %136 : vector<16x64xf32>
    %cst_30 = arith.constant 1.000000e+00 : f32
    %138 = vector.broadcast %cst_30 : f32 to vector<16x64xf32>
    %139 = arith.addf %138, %137 : vector<16x64xf32>
    %140 = arith.divf %138, %139 : vector<16x64xf32>
    %141 = arith.mulf %132, %115 : vector<16x64xf32>
    %142 = arith.mulf %131, %134 : vector<16x64xf32>
    %143 = arith.addf %141, %142 : vector<16x64xf32>
    %144 = math.tanh %143 : vector<16x64xf32>
    %145 = arith.mulf %140, %144 : vector<16x64xf32>
    %c5_i32 = arith.constant 5 : i32
    %146 = arith.index_cast %c5_i32 : i32 to index
    %c0_31 = arith.constant 0 : index
    %c0_32 = arith.constant 0 : index
    %147 = vector.load %arg2[%146, %c0_31, %c0_32] : memref<8x16x256xbf16, #tpu.memory_space<vmem>>, vector<1x16x256xbf16>
    %148 = vector.shape_cast %147 : vector<1x16x256xbf16> to vector<16x256xbf16>
    %149 = arith.extf %148 : vector<16x256xbf16> to vector<16x256xf32>
    %150 = arith.truncf %145 : vector<16x64xf32> to vector<16x64xbf16>
    %cst_33 = arith.constant dense<0.000000e+00> : vector<16x256xf32>
    %151 = tpu.matmul %150, %3, %cst_33 {dimension_numbers = #tpu.dot_dimension_numbers<[1], [0], [0], [1], [0, 0, 1, 1], [], []>} : vector<16x64xbf16>, vector<64x256xbf16>, vector<16x256xf32> -> vector<16x256xf32>
    %152 = arith.addf %149, %151 : vector<16x256xf32>
    %153 = vector.extract_strided_slice %152 {offsets = [0, 0], sizes = [16, 128], strides = [1, 1]} : vector<16x256xf32> to vector<16x128xf32>
    %154 = arith.negf %153 : vector<16x128xf32>
    %155 = math.exp %154 : vector<16x128xf32>
    %cst_34 = arith.constant 1.000000e+00 : f32
    %156 = vector.broadcast %cst_34 : f32 to vector<16x128xf32>
    %157 = arith.addf %156, %155 : vector<16x128xf32>
    %158 = arith.divf %156, %157 : vector<16x128xf32>
    %159 = vector.extract_strided_slice %158 {offsets = [0, 0], sizes = [16, 64], strides = [1, 1]} : vector<16x128xf32> to vector<16x64xf32>
    %160 = vector.extract_strided_slice %158 {offsets = [0, 64], sizes = [16, 64], strides = [1, 1]} : vector<16x128xf32> to vector<16x64xf32>
    %161 = vector.extract_strided_slice %152 {offsets = [0, 128], sizes = [16, 64], strides = [1, 1]} : vector<16x256xf32> to vector<16x64xf32>
    %162 = math.tanh %161 : vector<16x64xf32>
    %163 = vector.extract_strided_slice %152 {offsets = [0, 192], sizes = [16, 64], strides = [1, 1]} : vector<16x256xf32> to vector<16x64xf32>
    %164 = arith.negf %163 : vector<16x64xf32>
    %165 = math.exp %164 : vector<16x64xf32>
    %cst_35 = arith.constant 1.000000e+00 : f32
    %166 = vector.broadcast %cst_35 : f32 to vector<16x64xf32>
    %167 = arith.addf %166, %165 : vector<16x64xf32>
    %168 = arith.divf %166, %167 : vector<16x64xf32>
    %169 = arith.mulf %160, %143 : vector<16x64xf32>
    %170 = arith.mulf %159, %162 : vector<16x64xf32>
    %171 = arith.addf %169, %170 : vector<16x64xf32>
    %172 = math.tanh %171 : vector<16x64xf32>
    %173 = arith.mulf %168, %172 : vector<16x64xf32>
    %c6_i32 = arith.constant 6 : i32
    %174 = arith.index_cast %c6_i32 : i32 to index
    %c0_36 = arith.constant 0 : index
    %c0_37 = arith.constant 0 : index
    %175 = vector.load %arg2[%174, %c0_36, %c0_37] : memref<8x16x256xbf16, #tpu.memory_space<vmem>>, vector<1x16x256xbf16>
    %176 = vector.shape_cast %175 : vector<1x16x256xbf16> to vector<16x256xbf16>
    %177 = arith.extf %176 : vector<16x256xbf16> to vector<16x256xf32>
    %178 = arith.truncf %173 : vector<16x64xf32> to vector<16x64xbf16>
    %cst_38 = arith.constant dense<0.000000e+00> : vector<16x256xf32>
    %179 = tpu.matmul %178, %3, %cst_38 {dimension_numbers = #tpu.dot_dimension_numbers<[1], [0], [0], [1], [0, 0, 1, 1], [], []>} : vector<16x64xbf16>, vector<64x256xbf16>, vector<16x256xf32> -> vector<16x256xf32>
    %180 = arith.addf %177, %179 : vector<16x256xf32>
    %181 = vector.extract_strided_slice %180 {offsets = [0, 0], sizes = [16, 128], strides = [1, 1]} : vector<16x256xf32> to vector<16x128xf32>
    %182 = arith.negf %181 : vector<16x128xf32>
    %183 = math.exp %182 : vector<16x128xf32>
    %cst_39 = arith.constant 1.000000e+00 : f32
    %184 = vector.broadcast %cst_39 : f32 to vector<16x128xf32>
    %185 = arith.addf %184, %183 : vector<16x128xf32>
    %186 = arith.divf %184, %185 : vector<16x128xf32>
    %187 = vector.extract_strided_slice %186 {offsets = [0, 0], sizes = [16, 64], strides = [1, 1]} : vector<16x128xf32> to vector<16x64xf32>
    %188 = vector.extract_strided_slice %186 {offsets = [0, 64], sizes = [16, 64], strides = [1, 1]} : vector<16x128xf32> to vector<16x64xf32>
    %189 = vector.extract_strided_slice %180 {offsets = [0, 128], sizes = [16, 64], strides = [1, 1]} : vector<16x256xf32> to vector<16x64xf32>
    %190 = math.tanh %189 : vector<16x64xf32>
    %191 = vector.extract_strided_slice %180 {offsets = [0, 192], sizes = [16, 64], strides = [1, 1]} : vector<16x256xf32> to vector<16x64xf32>
    %192 = arith.negf %191 : vector<16x64xf32>
    %193 = math.exp %192 : vector<16x64xf32>
    %cst_40 = arith.constant 1.000000e+00 : f32
    %194 = vector.broadcast %cst_40 : f32 to vector<16x64xf32>
    %195 = arith.addf %194, %193 : vector<16x64xf32>
    %196 = arith.divf %194, %195 : vector<16x64xf32>
    %197 = arith.mulf %188, %171 : vector<16x64xf32>
    %198 = arith.mulf %187, %190 : vector<16x64xf32>
    %199 = arith.addf %197, %198 : vector<16x64xf32>
    %200 = math.tanh %199 : vector<16x64xf32>
    %201 = arith.mulf %196, %200 : vector<16x64xf32>
    %c7_i32 = arith.constant 7 : i32
    %202 = arith.index_cast %c7_i32 : i32 to index
    %c0_41 = arith.constant 0 : index
    %c0_42 = arith.constant 0 : index
    %203 = vector.load %arg2[%202, %c0_41, %c0_42] : memref<8x16x256xbf16, #tpu.memory_space<vmem>>, vector<1x16x256xbf16>
    %204 = vector.shape_cast %203 : vector<1x16x256xbf16> to vector<16x256xbf16>
    %205 = arith.extf %204 : vector<16x256xbf16> to vector<16x256xf32>
    %206 = arith.truncf %201 : vector<16x64xf32> to vector<16x64xbf16>
    %cst_43 = arith.constant dense<0.000000e+00> : vector<16x256xf32>
    %207 = tpu.matmul %206, %3, %cst_43 {dimension_numbers = #tpu.dot_dimension_numbers<[1], [0], [0], [1], [0, 0, 1, 1], [], []>} : vector<16x64xbf16>, vector<64x256xbf16>, vector<16x256xf32> -> vector<16x256xf32>
    %208 = arith.addf %205, %207 : vector<16x256xf32>
    %209 = vector.extract_strided_slice %208 {offsets = [0, 0], sizes = [16, 128], strides = [1, 1]} : vector<16x256xf32> to vector<16x128xf32>
    %210 = arith.negf %209 : vector<16x128xf32>
    %211 = math.exp %210 : vector<16x128xf32>
    %cst_44 = arith.constant 1.000000e+00 : f32
    %212 = vector.broadcast %cst_44 : f32 to vector<16x128xf32>
    %213 = arith.addf %212, %211 : vector<16x128xf32>
    %214 = arith.divf %212, %213 : vector<16x128xf32>
    %215 = vector.extract_strided_slice %214 {offsets = [0, 0], sizes = [16, 64], strides = [1, 1]} : vector<16x128xf32> to vector<16x64xf32>
    %216 = vector.extract_strided_slice %214 {offsets = [0, 64], sizes = [16, 64], strides = [1, 1]} : vector<16x128xf32> to vector<16x64xf32>
    %217 = vector.extract_strided_slice %208 {offsets = [0, 128], sizes = [16, 64], strides = [1, 1]} : vector<16x256xf32> to vector<16x64xf32>
    %218 = math.tanh %217 : vector<16x64xf32>
    %219 = vector.extract_strided_slice %208 {offsets = [0, 192], sizes = [16, 64], strides = [1, 1]} : vector<16x256xf32> to vector<16x64xf32>
    %220 = arith.negf %219 : vector<16x64xf32>
    %221 = math.exp %220 : vector<16x64xf32>
    %cst_45 = arith.constant 1.000000e+00 : f32
    %222 = vector.broadcast %cst_45 : f32 to vector<16x64xf32>
    %223 = arith.addf %222, %221 : vector<16x64xf32>
    %224 = arith.divf %222, %223 : vector<16x64xf32>
    %225 = arith.mulf %216, %199 : vector<16x64xf32>
    %226 = arith.mulf %215, %218 : vector<16x64xf32>
    %227 = arith.addf %225, %226 : vector<16x64xf32>
    %228 = math.tanh %227 : vector<16x64xf32>
    %229 = arith.mulf %224, %228 : vector<16x64xf32>
    %c8_i32 = arith.constant 8 : i32
    %c0_46 = arith.constant 0 : index
    %c0_47 = arith.constant 0 : index
    %230 = vector.load %arg9[%c0_46, %c0_47] : memref<16x64xf32, #tpu.memory_space<vmem>>, vector<16x64xf32>
    tpu.vector_store %arg9[%c0_46, %c0_47], %229 {strides = array<i32>} : memref<16x64xf32, #tpu.memory_space<vmem>>, vector<16x64xf32>,
    %c0_48 = arith.constant 0 : index
    %c0_49 = arith.constant 0 : index
    %231 = vector.load %arg10[%c0_48, %c0_49] : memref<16x64xf32, #tpu.memory_space<vmem>>, vector<16x64xf32>
    tpu.vector_store %arg10[%c0_48, %c0_49], %227 {strides = array<i32>} : memref<16x64xf32, #tpu.memory_space<vmem>>, vector<16x64xf32>,
    %c0_i32_50 = arith.constant 0 : i32
    %232 = arith.cmpi eq, %arg1, %c0_i32_50 : i32
    %233 = arith.extui %232 : i1 to i32
    %c0_i32_51 = arith.constant 0 : i32
    %234 = arith.cmpi ne, %233, %c0_i32_51 : i32
    scf.if %234 {
      %c0_52 = arith.constant 0 : index
      %c0_53 = arith.constant 0 : index
      %235 = vector.load %arg4[%c0_52, %c0_53] : memref<64x32xf32, #tpu.memory_space<vmem>>, vector<64x32xf32>
      %cst_54 = arith.constant dense<0.000000e+00> : vector<16x32xf32>
      %236 = tpu.matmul %229, %235, %cst_54 {dimension_numbers = #tpu.dot_dimension_numbers<[1], [0], [0], [1], [0, 0, 1, 1], [], []>} : vector<16x64xf32>, vector<64x32xf32>, vector<16x32xf32> -> vector<16x32xf32>
      %c0_55 = arith.constant 0 : index
      %c0_56 = arith.constant 0 : index
      %237 = vector.load %arg5[%c0_55, %c0_56] : memref<1x32xf32, #tpu.memory_space<vmem>>, vector<1x32xf32>
      %238 = vector.broadcast %237 : vector<1x32xf32> to vector<16x32xf32>
      %239 = arith.addf %236, %238 : vector<16x32xf32>
      %cst_57 = arith.constant 0.000000e+00 : f32
      %240 = vector.broadcast %cst_57 : f32 to vector<16x32xf32>
      %241 = arith.maximumf %239, %240 : vector<16x32xf32>
      %c0_58 = arith.constant 0 : index
      %c0_59 = arith.constant 0 : index
      %242 = vector.load %arg6[%c0_58, %c0_59] : memref<32x128xf32, #tpu.memory_space<vmem>>, vector<32x128xf32>
      %cst_60 = arith.constant dense<0.000000e+00> : vector<16x128xf32>
      %243 = tpu.matmul %241, %242, %cst_60 {dimension_numbers = #tpu.dot_dimension_numbers<[1], [0], [0], [1], [0, 0, 1, 1], [], []>} : vector<16x32xf32>, vector<32x128xf32>, vector<16x128xf32> -> vector<16x128xf32>
      %c0_61 = arith.constant 0 : index
      %c0_62 = arith.constant 0 : index
      %244 = vector.load %arg7[%c0_61, %c0_62] : memref<1x128xf32, #tpu.memory_space<vmem>>, vector<1x128xf32>
      %245 = vector.broadcast %244 : vector<1x128xf32> to vector<16x128xf32>
      %246 = arith.addf %243, %245 : vector<16x128xf32>
      %c0_63 = arith.constant 0 : index
      %c0_64 = arith.constant 0 : index
      %247 = vector.load %arg8[%c0_63, %c0_64] : memref<16x128xf32, #tpu.memory_space<vmem>>, vector<16x128xf32>
      tpu.vector_store %arg8[%c0_63, %c0_64], %246 {strides = array<i32>} : memref<16x128xf32, #tpu.memory_space<vmem>>, vector<16x128xf32>,
    } else {
    }
    return
  }
  func.func @transform_0(%arg0: i32, %arg1: i32) -> (i32, i32, i32) {
    %c0_i32 = arith.constant 0 : i32
    %c0_i32_0 = arith.constant 0 : i32
    return %arg1, %arg0, %c0_i32 : i32, i32, i32
  }
  func.func @transform_1(%arg0: i32, %arg1: i32) -> (i32, i32) {
    %c0_i32 = arith.constant 0 : i32
    %c0_i32_0 = arith.constant 0 : i32
    %c0_i32_1 = arith.constant 0 : i32
    return %c0_i32, %c0_i32_0 : i32, i32
  }
  func.func @transform_2(%arg0: i32, %arg1: i32) -> (i32, i32) {
    %c0_i32 = arith.constant 0 : i32
    %c0_i32_0 = arith.constant 0 : i32
    %c0_i32_1 = arith.constant 0 : i32
    return %c0_i32, %c0_i32_0 : i32, i32
  }
  func.func @transform_3(%arg0: i32, %arg1: i32) -> (i32, i32) {
    %c0_i32 = arith.constant 0 : i32
    %c0_i32_0 = arith.constant 0 : i32
    %c0_i32_1 = arith.constant 0 : i32
    return %c0_i32, %c0_i32_0 : i32, i32
  }
  func.func @transform_4(%arg0: i32, %arg1: i32) -> (i32, i32) {
    %c0_i32 = arith.constant 0 : i32
    %c0_i32_0 = arith.constant 0 : i32
    %c0_i32_1 = arith.constant 0 : i32
    return %c0_i32, %c0_i32_0 : i32, i32
  }
  func.func @transform_5(%arg0: i32, %arg1: i32) -> (i32, i32) {
    %c0_i32 = arith.constant 0 : i32
    %c0_i32_0 = arith.constant 0 : i32
    %c0_i32_1 = arith.constant 0 : i32
    return %c0_i32, %c0_i32_0 : i32, i32
  }
  func.func @transform_6(%arg0: i32, %arg1: i32) -> (i32, i32) {
    %c0_i32 = arith.constant 0 : i32
    %c0_i32_0 = arith.constant 0 : i32
    return %arg0, %c0_i32 : i32, i32
  }
}

</mosaic_0001>

<llo_original>
// kernel: lstm_model_forward.1
$region0: #{lstm_model_forward.1}
  #allocation0 [shape = 'u32[]', space=smem, size = 0x4, offset = 0x4, fixed_abs, tag = 'smem constant byte address 0x4 - core index']
  #allocation1 [shape = 'u32[144,128]{1,0:T(1,128)}', space=vmem, size = 0x12000, scoped, tag = 'internal scratch']
  #allocation2 [shape = 'f32[16,64]{1,0:T(8,128)}', space=vmem, size = 0x2000, scoped, tag = 'scratch operand']
  #allocation3 [shape = 'f32[16,64]{1,0:T(8,128)}', space=vmem, size = 0x2000, scoped, tag = 'scratch operand']
  %s0 = inlined_call_operand.vmem [shape: bf16[8,16,256], index: 0, kind: input, shape index: {}]
  %s1 = inlined_call_operand.vmem [shape: bf16[64,256], index: 1, kind: input, shape index: {}]
  %s2 = inlined_call_operand.vmem [shape: f32[64,32], index: 2, kind: input, shape index: {}]
  %s3 = inlined_call_operand.vmem [shape: f32[1,32], index: 3, kind: input, shape index: {}]
  %s4 = inlined_call_operand.vmem [shape: f32[32,128], index: 4, kind: input, shape index: {}]
  %s5 = inlined_call_operand.vmem [shape: f32[1,128], index: 5, kind: input, shape index: {}]
  %s6 = inlined_call_operand.vmem [shape: f32[16,128], index: 6, kind: output, shape index: {}]
  %s7 = sld [smem:[#allocation0]]
  $region42: #{lstm_model_forward.1} parent=0
    _
  %s9 = ssub.s32 1, %s7
  %s10 = scalar_select 0, %s9, %s7
  // Predicated region
  $region2: #{lstm_model_forward.1} parent=0 // pred_check
    _
  $region3: #{lstm_model_forward.1} parent=0 // pred_check_branch
    %12 = sbr.rel (0) target = $region5
  $region4: #{lstm_model_forward.1} parent=0 // pred_region
    _
  $region5: #{lstm_model_forward.1} parent=0 // pred_fallthru
    _
  // Predicated region
  $region6: #{lstm_model_forward.1} parent=0 // pred_check
    _
  $region7: #{lstm_model_forward.1} parent=0 // pred_check_branch
    %14 = sbr.rel (0) target = $region9
  $region8: #{lstm_model_forward.1} parent=0 // pred_region
    _
  $region9: #{lstm_model_forward.1} parent=0 // pred_fallthru
    _
  // Predicated region
  $region10: #{lstm_model_forward.1} parent=0 // pred_check
    _
  $region11: #{lstm_model_forward.1} parent=0 // pred_check_branch
    %16 = sbr.rel (0) target = $region13
  $region12: #{lstm_model_forward.1} parent=0 // pred_region
    _
  $region13: #{lstm_model_forward.1} parent=0 // pred_fallthru
    _
  // Predicated region
  $region14: #{lstm_model_forward.1} parent=0 // pred_check
    _
  $region15: #{lstm_model_forward.1} parent=0 // pred_check_branch
    %18 = sbr.rel (0) target = $region17
  $region16: #{lstm_model_forward.1} parent=0 // pred_region
    _
  $region17: #{lstm_model_forward.1} parent=0 // pred_fallthru
    _
  // Predicated region
  $region18: #{lstm_model_forward.1} parent=0 // pred_check
    _
  $region19: #{lstm_model_forward.1} parent=0 // pred_check_branch
    %20 = sbr.rel (0) target = $region21
  $region20: #{lstm_model_forward.1} parent=0 // pred_region
    _
  $region21: #{lstm_model_forward.1} parent=0 // pred_fallthru
    _
  // Predicated region
  $region22: #{lstm_model_forward.1} parent=0 // pred_check
    _
  $region23: #{lstm_model_forward.1} parent=0 // pred_check_branch
    %22 = sbr.rel (0) target = $region25
  $region24: #{lstm_model_forward.1} parent=0 // pred_region
    _
  $region25: #{lstm_model_forward.1} parent=0 // pred_fallthru
    _
  %p24 = scmp.eq.s32.totalorder 0, 0
  // Predicated region
  $region26: #{lstm_model_forward.1} parent=0 // pred_check
    %p25 = pneg %p24
  $region27: #{lstm_model_forward.1} parent=0 // pred_check_branch
    %27 = sbr.rel (%p25) target = $region29
  $region28: #{lstm_model_forward.1} parent=0 // pred_region
    %vm28 = vcmask 523264
    %29 = vst.msk [vmem:[#allocation2] sm:$0xff] %vm28, 0.0
    %30 = vst.msk [vmem:[#allocation2 + $0x8] sm:$0xff] %vm28, 0.0
    %31 = vst.msk [vmem:[#allocation3] sm:$0xff] %vm28, 0.0
    %32 = vst.msk [vmem:[#allocation3 + $0x8] sm:$0xff] %vm28, 0.0
  $region29: #{lstm_model_forward.1} parent=0 // pred_fallthru
    _
  %v33 = vld [vmem:[%s1] sm:$0xff]
  %v34 = vld [vmem:[%s1 + $0x8] sm:$0xff]
  %v35 = vld [vmem:[%s1 + $0x10] sm:$0xff]
  %v36 = vld [vmem:[%s1 + $0x18] sm:$0xff]
  %v37 = vld [vmem:[%s1 + $0x20] sm:$0xff]
  %v38 = vld [vmem:[%s1 + $0x28] sm:$0xff]
  %v39 = vld [vmem:[%s1 + $0x30] sm:$0xff]
  %v40 = vld [vmem:[%s1 + $0x38] sm:$0xff]
  %v41 = vld [vmem:[#allocation2] sm:$0xff]
  %v42 = vld [vmem:[#allocation2 + $0x8] sm:$0xff]
  %v43 = vld [vmem:[#allocation3] sm:$0xff]
  %v44 = vld [vmem:[#allocation3 + $0x8] sm:$0xff]
  %v45 = vld [vmem:[%s0] sm:$0xff]
  %v46 = vld [vmem:[%s0 + $0x8] sm:$0xff]
  %v47 = vunpack.c.l.bf16 %v45
  %v48 = vunpack.c.h.bf16 %v45
  %v49 = vunpack.c.l.bf16 %v46
  %v50 = vunpack.c.h.bf16 %v46
  %v51 = vpack.c.bf16 %v42, %v41
  %v60 = vunpack.c.l.b16 %v33
  %v61 = vunpack.c.h.b16 %v33
  %v62 = vunpack.c.l.b16 %v34
  %v63 = vunpack.c.h.b16 %v34
  %v64 = vunpack.c.l.b16 %v35
  %v65 = vunpack.c.h.b16 %v35
  %v66 = vunpack.c.l.b16 %v36
  %v67 = vunpack.c.h.b16 %v36
  %v68 = vunpack.c.l.b16 %v37
  %v69 = vunpack.c.h.b16 %v37
  %v70 = vunpack.c.l.b16 %v38
  %v71 = vunpack.c.h.b16 %v38
  %v72 = vunpack.c.l.b16 %v39
  %v73 = vunpack.c.h.b16 %v39
  %v74 = vunpack.c.l.b16 %v40
  %v75 = vunpack.c.h.b16 %v40
  %v76 = vpack.c.b16 %v62, %v60
  %v77 = vpack.c.b16 %v63, %v61
  %v78 = vpack.c.b16 %v66, %v64
  %v79 = vpack.c.b16 %v67, %v65
  %v80 = vpack.c.b16 %v70, %v68
  %v81 = vpack.c.b16 %v71, %v69
  %v82 = vpack.c.b16 %v74, %v72
  %v83 = vpack.c.b16 %v75, %v73
  %vm92 = vcmask 523264
  %v94 = vsel %vm92, %v51, 0
  %96 = vmatprep.subr.bf16.mxu0 %v77
  %97 = vmatpush1.bf16.msra.mxu0 %v76
  %98 = vmatprep.subr.bf16.mxu0 %v79
  %99 = vmatpush1.bf16.msra.mxu0 %v78
  %100 = vmatprep.subr.bf16.mxu0 %v81
  %101 = vmatpush1.bf16.msra.mxu0 %v80
  %102 = vmatprep.subr.bf16.mxu0 %v83
  %103 = vmatpush1.bf16.msra.mxu0 %v82
  %104 = vmatprep.subr.bf16.mxu0 0
  %105 = vmatpush1.bf16.msra.mxu0 0
  %106 = vmatprep.subr.bf16.mxu0 0
  %107 = vmatpush1.bf16.msra.mxu0 0
  %108 = vmatprep.subr.bf16.mxu0 0
  %109 = vmatpush1.bf16.msra.mxu0 0
  %110 = vmatprep.subr.bf16.mxu0 0
  %111 = vmatpush1.bf16.msra.mxu0 0
  %112 = vmatprep.subr.bf16.mxu0 0
  %113 = vmatpush1.bf16.msra.mxu0 0
  %114 = vmatprep.subr.bf16.mxu0 0
  %115 = vmatpush1.bf16.msra.mxu0 0
  %116 = vmatprep.subr.bf16.mxu0 0
  %117 = vmatpush1.bf16.msra.mxu0 0
  %118 = vmatprep.subr.bf16.mxu0 0
  %119 = vmatpush1.bf16.msra.mxu0 0
  %120 = vmatprep.subr.bf16.mxu0 0
  %121 = vmatpush1.bf16.msra.mxu0 0
  %122 = vmatprep.subr.bf16.mxu0 0
  %123 = vmatpush1.bf16.msra.mxu0 0
  %124 = vmatprep.subr.bf16.mxu0 0
  %125 = vmatpush1.bf16.msra.mxu0 0
  %126 = vmatprep.subr.bf16.mxu0 0
  %127 = vmatpush1.bf16.msra.mxu0 0
  %128 = vmatprep.mubr.bf16.mxu0 0
  %129 = vmatmul.mubr.bf16.gmra.mrb[0].mxu0 %v94
  %v130 = vpop.f32.mrb[0].mxu0
  %v131 = vadd.f32 0.0, %v130
  %v132 = vpop.f32.mrb[0].mxu0
  %v133 = vadd.f32 0.0, %v132
  %v134 = vpop.f32.mrb[0].mxu0
  %v135 = vadd.f32 0.0, %v134
  %v136 = vpop.f32.mrb[0].mxu0
  %v137 = vadd.f32 0.0, %v136
  %138 = vdwg.mxu0
  %v139 = vadd.f32 %v47, %v131
  %v140 = vadd.f32 %v48, %v133
  %v141 = vadd.f32 %v49, %v135
  %v142 = vadd.f32 %v50, %v137
  %v143 = vxor.u32 %v139, 2147483648
  %v144 = vxor.u32 %v141, 2147483648
  %v145 = vmul.f32 %v143, 1.442695
  %v146 = vpow.pop %v145
  %v147 = vmul.f32 %v144, 1.442695
  %v148 = vpow.pop %v147
  %v149 = vadd.f32 %v146, 1.0
  %v150 = vadd.f32 %v148, 1.0
  %v151 = vrcp.pop %v149
  %v152 = vmul.f32 1.0, %v151
  %v153 = vrcp.pop %v150
  %v154 = vmul.f32 1.0, %v153
  %v155 = vtanh.pop %v140
  %v156 = vtanh.pop %v142
  %v157 = vxor.u32 %v140, 2147483648
  %v158 = vxor.u32 %v142, 2147483648
  %v159 = vmul.f32 %v157, 1.442695
  %v160 = vpow.pop %v159
  %v161 = vmul.f32 %v158, 1.442695
  %v162 = vpow.pop %v161
  %v163 = vadd.f32 %v160, 1.0
  %v164 = vadd.f32 %v162, 1.0
  %v165 = vrcp.pop %v163
  %v166 = vmul.f32 1.0, %v165
  %v167 = vrcp.pop %v164
  %v168 = vmul.f32 1.0, %v167
  %171 = vrot.lane.b32.xlu0 %v43, 64
  %v172 = vpop.permute.xlu0 %171
  %173 = vrot.lane.b32.xlu0 %v44, 64
  %v174 = vpop.permute.xlu0 %173
  %v177 = vmul.f32 %v152, %v172
  %v178 = vmul.f32 %v154, %v174
  %v179 = vmul.f32 %v152, %v155
  %v180 = vmul.f32 %v154, %v156
  %183 = vrot.lane.b32.xlu0 %v179, 64
  %v184 = vpop.permute.xlu0 %183
  %185 = vrot.lane.b32.xlu0 %v180, 64
  %v186 = vpop.permute.xlu0 %185
  %v189 = vadd.f32 %v177, %v184
  %v190 = vadd.f32 %v178, %v186
  %v191 = vtanh.pop %v189
  %v192 = vtanh.pop %v190
  %v193 = vmul.f32 %v166, %v191
  %v194 = vmul.f32 %v168, %v192
  %s195 = scalar_lea.vmem %s0, 16
  %v196 = vld [vmem:[%s195] sm:$0xff]
  %v197 = vld [vmem:[%s195 + $0x8] sm:$0xff]
  %v198 = vunpack.c.l.bf16 %v196
  %v199 = vunpack.c.h.bf16 %v196
  %v200 = vunpack.c.l.bf16 %v197
  %v201 = vunpack.c.h.bf16 %v197
  %v202 = vpack.c.bf16 %v194, %v193
  %204 = vrot.lane.b32.xlu0 %v202, 64
  %v205 = vpop.permute.xlu0 %204
  %v207 = vsel %vm92, %v205, 0
  %209 = vmatprep.subr.bf16.mxu0 %v77
  %210 = vmatpush1.bf16.msra.mxu0 %v76
  %211 = vmatprep.subr.bf16.mxu0 %v79
  %212 = vmatpush1.bf16.msra.mxu0 %v78
  %213 = vmatprep.subr.bf16.mxu0 %v81
  %214 = vmatpush1.bf16.msra.mxu0 %v80
  %215 = vmatprep.subr.bf16.mxu0 %v83
  %216 = vmatpush1.bf16.msra.mxu0 %v82
  %217 = vmatprep.subr.bf16.mxu0 0
  %218 = vmatpush1.bf16.msra.mxu0 0
  %219 = vmatprep.subr.bf16.mxu0 0
  %220 = vmatpush1.bf16.msra.mxu0 0
  %221 = vmatprep.subr.bf16.mxu0 0
  %222 = vmatpush1.bf16.msra.mxu0 0
  %223 = vmatprep.subr.bf16.mxu0 0
  %224 = vmatpush1.bf16.msra.mxu0 0
  %225 = vmatprep.subr.bf16.mxu0 0
  %226 = vmatpush1.bf16.msra.mxu0 0
  %227 = vmatprep.subr.bf16.mxu0 0
  %228 = vmatpush1.bf16.msra.mxu0 0
  %229 = vmatprep.subr.bf16.mxu0 0
  %230 = vmatpush1.bf16.msra.mxu0 0
  %231 = vmatprep.subr.bf16.mxu0 0
  %232 = vmatpush1.bf16.msra.mxu0 0
  %233 = vmatprep.subr.bf16.mxu0 0
  %234 = vmatpush1.bf16.msra.mxu0 0
  %235 = vmatprep.subr.bf16.mxu0 0
  %236 = vmatpush1.bf16.msra.mxu0 0
  %237 = vmatprep.subr.bf16.mxu0 0
  %238 = vmatpush1.bf16.msra.mxu0 0
  %239 = vmatprep.subr.bf16.mxu0 0
  %240 = vmatpush1.bf16.msra.mxu0 0
  %241 = vmatprep.mubr.bf16.mxu0 0
  %242 = vmatmul.mubr.bf16.gmra.mrb[0].mxu0 %v207
  %v243 = vpop.f32.mrb[0].mxu0
  %v244 = vadd.f32 0.0, %v243
  %v245 = vpop.f32.mrb[0].mxu0
  %v246 = vadd.f32 0.0, %v245
  %v247 = vpop.f32.mrb[0].mxu0
  %v248 = vadd.f32 0.0, %v247
  %v249 = vpop.f32.mrb[0].mxu0
  %v250 = vadd.f32 0.0, %v249
  %251 = vdwg.mxu0
  %v252 = vadd.f32 %v198, %v244
  %v253 = vadd.f32 %v199, %v246
  %v254 = vadd.f32 %v200, %v248
  %v255 = vadd.f32 %v201, %v250
  %v256 = vxor.u32 %v252, 2147483648
  %v257 = vxor.u32 %v254, 2147483648
  %v258 = vmul.f32 %v256, 1.442695
  %v259 = vpow.pop %v258
  %v260 = vmul.f32 %v257, 1.442695
  %v261 = vpow.pop %v260
  %v262 = vadd.f32 %v259, 1.0
  %v263 = vadd.f32 %v261, 1.0
  %v264 = vrcp.pop %v262
  %v265 = vmul.f32 1.0, %v264
  %v266 = vrcp.pop %v263
  %v267 = vmul.f32 1.0, %v266
  %v268 = vtanh.pop %v253
  %v269 = vtanh.pop %v255
  %v270 = vxor.u32 %v253, 2147483648
  %v271 = vxor.u32 %v255, 2147483648
  %v272 = vmul.f32 %v270, 1.442695
  %v273 = vpow.pop %v272
  %v274 = vmul.f32 %v271, 1.442695
  %v275 = vpow.pop %v274
  %v276 = vadd.f32 %v273, 1.0
  %v277 = vadd.f32 %v275, 1.0
  %v278 = vrcp.pop %v276
  %v279 = vmul.f32 1.0, %v278
  %v280 = vrcp.pop %v277
  %v281 = vmul.f32 1.0, %v280
  %v282 = vmul.f32 %v265, %v189
  %v283 = vmul.f32 %v267, %v190
  %v284 = vmul.f32 %v265, %v268
  %v285 = vmul.f32 %v267, %v269
  %288 = vrot.lane.b32.xlu0 %v284, 64
  %v289 = vpop.permute.xlu0 %288
  %290 = vrot.lane.b32.xlu0 %v285, 64
  %v291 = vpop.permute.xlu0 %290
  %v294 = vadd.f32 %v282, %v289
  %v295 = vadd.f32 %v283, %v291
  %v296 = vtanh.pop %v294
  %v297 = vtanh.pop %v295
  %v298 = vmul.f32 %v279, %v296
  %v299 = vmul.f32 %v281, %v297
  %s300 = scalar_lea.vmem %s0, 32
  %v301 = vld [vmem:[%s300] sm:$0xff]
  %v302 = vld [vmem:[%s300 + $0x8] sm:$0xff]
  %v303 = vunpack.c.l.bf16 %v301
  %v304 = vunpack.c.h.bf16 %v301
  %v305 = vunpack.c.l.bf16 %v302
  %v306 = vunpack.c.h.bf16 %v302
  %v307 = vpack.c.bf16 %v299, %v298
  %309 = vrot.lane.b32.xlu0 %v307, 64
  %v310 = vpop.permute.xlu0 %309
  %v312 = vsel %vm92, %v310, 0
  %314 = vmatprep.subr.bf16.mxu0 %v77
  %315 = vmatpush1.bf16.msra.mxu0 %v76
  %316 = vmatprep.subr.bf16.mxu0 %v79
  %317 = vmatpush1.bf16.msra.mxu0 %v78
  %318 = vmatprep.subr.bf16.mxu0 %v81
  %319 = vmatpush1.bf16.msra.mxu0 %v80
  %320 = vmatprep.subr.bf16.mxu0 %v83
  %321 = vmatpush1.bf16.msra.mxu0 %v82
  %322 = vmatprep.subr.bf16.mxu0 0
  %323 = vmatpush1.bf16.msra.mxu0 0
  %324 = vmatprep.subr.bf16.mxu0 0
  %325 = vmatpush1.bf16.msra.mxu0 0
  %326 = vmatprep.subr.bf16.mxu0 0
  %327 = vmatpush1.bf16.msra.mxu0 0
  %328 = vmatprep.subr.bf16.mxu0 0
  %329 = vmatpush1.bf16.msra.mxu0 0
  %330 = vmatprep.subr.bf16.mxu0 0
  %331 = vmatpush1.bf16.msra.mxu0 0
  %332 = vmatprep.subr.bf16.mxu0 0
  %333 = vmatpush1.bf16.msra.mxu0 0
  %334 = vmatprep.subr.bf16.mxu0 0
  %335 = vmatpush1.bf16.msra.mxu0 0
  %336 = vmatprep.subr.bf16.mxu0 0
  %337 = vmatpush1.bf16.msra.mxu0 0
  %338 = vmatprep.subr.bf16.mxu0 0
  %339 = vmatpush1.bf16.msra.mxu0 0
  %340 = vmatprep.subr.bf16.mxu0 0
  %341 = vmatpush1.bf16.msra.mxu0 0
  %342 = vmatprep.subr.bf16.mxu0 0
  %343 = vmatpush1.bf16.msra.mxu0 0
  %344 = vmatprep.subr.bf16.mxu0 0
  %345 = vmatpush1.bf16.msra.mxu0 0
  %346 = vmatprep.mubr.bf16.mxu0 0
  %347 = vmatmul.mubr.bf16.gmra.mrb[0].mxu0 %v312
  %v348 = vpop.f32.mrb[0].mxu0
  %v349 = vadd.f32 0.0, %v348
  %v350 = vpop.f32.mrb[0].mxu0
  %v351 = vadd.f32 0.0, %v350
  %v352 = vpop.f32.mrb[0].mxu0
  %v353 = vadd.f32 0.0, %v352
  %v354 = vpop.f32.mrb[0].mxu0
  %v355 = vadd.f32 0.0, %v354
  %356 = vdwg.mxu0
  %v357 = vadd.f32 %v303, %v349
  %v358 = vadd.f32 %v304, %v351
  %v359 = vadd.f32 %v305, %v353
  %v360 = vadd.f32 %v306, %v355
  %v361 = vxor.u32 %v357, 2147483648
  %v362 = vxor.u32 %v359, 2147483648
  %v363 = vmul.f32 %v361, 1.442695
  %v364 = vpow.pop %v363
  %v365 = vmul.f32 %v362, 1.442695
  %v366 = vpow.pop %v365
  %v367 = vadd.f32 %v364, 1.0
  %v368 = vadd.f32 %v366, 1.0
  %v369 = vrcp.pop %v367
  %v370 = vmul.f32 1.0, %v369
  %v371 = vrcp.pop %v368
  %v372 = vmul.f32 1.0, %v371
  %v373 = vtanh.pop %v358
  %v374 = vtanh.pop %v360
  %v375 = vxor.u32 %v358, 2147483648
  %v376 = vxor.u32 %v360, 2147483648
  %v377 = vmul.f32 %v375, 1.442695
  %v378 = vpow.pop %v377
  %v379 = vmul.f32 %v376, 1.442695
  %v380 = vpow.pop %v379
  %v381 = vadd.f32 %v378, 1.0
  %v382 = vadd.f32 %v380, 1.0
  %v383 = vrcp.pop %v381
  %v384 = vmul.f32 1.0, %v383
  %v385 = vrcp.pop %v382
  %v386 = vmul.f32 1.0, %v385
  %v387 = vmul.f32 %v370, %v294
  %v388 = vmul.f32 %v372, %v295
  %v389 = vmul.f32 %v370, %v373
  %v390 = vmul.f32 %v372, %v374
  %393 = vrot.lane.b32.xlu0 %v389, 64
  %v394 = vpop.permute.xlu0 %393
  %395 = vrot.lane.b32.xlu0 %v390, 64
  %v396 = vpop.permute.xlu0 %395
  %v399 = vadd.f32 %v387, %v394
  %v400 = vadd.f32 %v388, %v396
  %v401 = vtanh.pop %v399
  %v402 = vtanh.pop %v400
  %v403 = vmul.f32 %v384, %v401
  %v404 = vmul.f32 %v386, %v402
  %s405 = scalar_lea.vmem %s0, 48
  %v406 = vld [vmem:[%s405] sm:$0xff]
  %v407 = vld [vmem:[%s405 + $0x8] sm:$0xff]
  %v408 = vunpack.c.l.bf16 %v406
  %v409 = vunpack.c.h.bf16 %v406
  %v410 = vunpack.c.l.bf16 %v407
  %v411 = vunpack.c.h.bf16 %v407
  %v412 = vpack.c.bf16 %v404, %v403
  %414 = vrot.lane.b32.xlu0 %v412, 64
  %v415 = vpop.permute.xlu0 %414
  %v417 = vsel %vm92, %v415, 0
  %419 = vmatprep.subr.bf16.mxu0 %v77
  %420 = vmatpush1.bf16.msra.mxu0 %v76
  %421 = vmatprep.subr.bf16.mxu0 %v79
  %422 = vmatpush1.bf16.msra.mxu0 %v78
  %423 = vmatprep.subr.bf16.mxu0 %v81
  %424 = vmatpush1.bf16.msra.mxu0 %v80
  %425 = vmatprep.subr.bf16.mxu0 %v83
  %426 = vmatpush1.bf16.msra.mxu0 %v82
  %427 = vmatprep.subr.bf16.mxu0 0
  %428 = vmatpush1.bf16.msra.mxu0 0
  %429 = vmatprep.subr.bf16.mxu0 0
  %430 = vmatpush1.bf16.msra.mxu0 0
  %431 = vmatprep.subr.bf16.mxu0 0
  %432 = vmatpush1.bf16.msra.mxu0 0
  %433 = vmatprep.subr.bf16.mxu0 0
  %434 = vmatpush1.bf16.msra.mxu0 0
  %435 = vmatprep.subr.bf16.mxu0 0
  %436 = vmatpush1.bf16.msra.mxu0 0
  %437 = vmatprep.subr.bf16.mxu0 0
  %438 = vmatpush1.bf16.msra.mxu0 0
  %439 = vmatprep.subr.bf16.mxu0 0
  %440 = vmatpush1.bf16.msra.mxu0 0
  %441 = vmatprep.subr.bf16.mxu0 0
  %442 = vmatpush1.bf16.msra.mxu0 0
  %443 = vmatprep.subr.bf16.mxu0 0
  %444 = vmatpush1.bf16.msra.mxu0 0
  %445 = vmatprep.subr.bf16.mxu0 0
  %446 = vmatpush1.bf16.msra.mxu0 0
  %447 = vmatprep.subr.bf16.mxu0 0
  %448 = vmatpush1.bf16.msra.mxu0 0
  %449 = vmatprep.subr.bf16.mxu0 0
  %450 = vmatpush1.bf16.msra.mxu0 0
  %451 = vmatprep.mubr.bf16.mxu0 0
  %452 = vmatmul.mubr.bf16.gmra.mrb[0].mxu0 %v417
  %v453 = vpop.f32.mrb[0].mxu0
  %v454 = vadd.f32 0.0, %v453
  %v455 = vpop.f32.mrb[0].mxu0
  %v456 = vadd.f32 0.0, %v455
  %v457 = vpop.f32.mrb[0].mxu0
  %v458 = vadd.f32 0.0, %v457
  %v459 = vpop.f32.mrb[0].mxu0
  %v460 = vadd.f32 0.0, %v459
  %461 = vdwg.mxu0
  %v462 = vadd.f32 %v408, %v454
  %v463 = vadd.f32 %v409, %v456
  %v464 = vadd.f32 %v410, %v458
  %v465 = vadd.f32 %v411, %v460
  %v466 = vxor.u32 %v462, 2147483648
  %v467 = vxor.u32 %v464, 2147483648
  %v468 = vmul.f32 %v466, 1.442695
  %v469 = vpow.pop %v468
  %v470 = vmul.f32 %v467, 1.442695
  %v471 = vpow.pop %v470
  %v472 = vadd.f32 %v469, 1.0
  %v473 = vadd.f32 %v471, 1.0
  %v474 = vrcp.pop %v472
  %v475 = vmul.f32 1.0, %v474
  %v476 = vrcp.pop %v473
  %v477 = vmul.f32 1.0, %v476
  %v478 = vtanh.pop %v463
  %v479 = vtanh.pop %v465
  %v480 = vxor.u32 %v463, 2147483648
  %v481 = vxor.u32 %v465, 2147483648
  %v482 = vmul.f32 %v480, 1.442695
  %v483 = vpow.pop %v482
  %v484 = vmul.f32 %v481, 1.442695
  %v485 = vpow.pop %v484
  %v486 = vadd.f32 %v483, 1.0
  %v487 = vadd.f32 %v485, 1.0
  %v488 = vrcp.pop %v486
  %v489 = vmul.f32 1.0, %v488
  %v490 = vrcp.pop %v487
  %v491 = vmul.f32 1.0, %v490
  %v492 = vmul.f32 %v475, %v399
  %v493 = vmul.f32 %v477, %v400
  %v494 = vmul.f32 %v475, %v478
  %v495 = vmul.f32 %v477, %v479
  %498 = vrot.lane.b32.xlu0 %v494, 64
  %v499 = vpop.permute.xlu0 %498
  %500 = vrot.lane.b32.xlu0 %v495, 64
  %v501 = vpop.permute.xlu0 %500
  %v504 = vadd.f32 %v492, %v499
  %v505 = vadd.f32 %v493, %v501
  %v506 = vtanh.pop %v504
  %v507 = vtanh.pop %v505
  %v508 = vmul.f32 %v489, %v506
  %v509 = vmul.f32 %v491, %v507
  %s510 = scalar_lea.vmem %s0, 64
  %v511 = vld [vmem:[%s510] sm:$0xff]
  %v512 = vld [vmem:[%s510 + $0x8] sm:$0xff]
  %v513 = vunpack.c.l.bf16 %v511
  %v514 = vunpack.c.h.bf16 %v511
  %v515 = vunpack.c.l.bf16 %v512
  %v516 = vunpack.c.h.bf16 %v512
  %v517 = vpack.c.bf16 %v509, %v508
  %519 = vrot.lane.b32.xlu0 %v517, 64
  %v520 = vpop.permute.xlu0 %519
  %v522 = vsel %vm92, %v520, 0
  %524 = vmatprep.subr.bf16.mxu0 %v77
  %525 = vmatpush1.bf16.msra.mxu0 %v76
  %526 = vmatprep.subr.bf16.mxu0 %v79
  %527 = vmatpush1.bf16.msra.mxu0 %v78
  %528 = vmatprep.subr.bf16.mxu0 %v81
  %529 = vmatpush1.bf16.msra.mxu0 %v80
  %530 = vmatprep.subr.bf16.mxu0 %v83
  %531 = vmatpush1.bf16.msra.mxu0 %v82
  %532 = vmatprep.subr.bf16.mxu0 0
  %533 = vmatpush1.bf16.msra.mxu0 0
  %534 = vmatprep.subr.bf16.mxu0 0
  %535 = vmatpush1.bf16.msra.mxu0 0
  %536 = vmatprep.subr.bf16.mxu0 0
  %537 = vmatpush1.bf16.msra.mxu0 0
  %538 = vmatprep.subr.bf16.mxu0 0
  %539 = vmatpush1.bf16.msra.mxu0 0
  %540 = vmatprep.subr.bf16.mxu0 0
  %541 = vmatpush1.bf16.msra.mxu0 0
  %542 = vmatprep.subr.bf16.mxu0 0
  %543 = vmatpush1.bf16.msra.mxu0 0
  %544 = vmatprep.subr.bf16.mxu0 0
  %545 = vmatpush1.bf16.msra.mxu0 0
  %546 = vmatprep.subr.bf16.mxu0 0
  %547 = vmatpush1.bf16.msra.mxu0 0
  %548 = vmatprep.subr.bf16.mxu0 0
  %549 = vmatpush1.bf16.msra.mxu0 0
  %550 = vmatprep.subr.bf16.mxu0 0
  %551 = vmatpush1.bf16.msra.mxu0 0
  %552 = vmatprep.subr.bf16.mxu0 0
  %553 = vmatpush1.bf16.msra.mxu0 0
  %554 = vmatprep.subr.bf16.mxu0 0
  %555 = vmatpush1.bf16.msra.mxu0 0
  %556 = vmatprep.mubr.bf16.mxu0 0
  %557 = vmatmul.mubr.bf16.gmra.mrb[0].mxu0 %v522
  %v558 = vpop.f32.mrb[0].mxu0
  %v559 = vadd.f32 0.0, %v558
  %v560 = vpop.f32.mrb[0].mxu0
  %v561 = vadd.f32 0.0, %v560
  %v562 = vpop.f32.mrb[0].mxu0
  %v563 = vadd.f32 0.0, %v562
  %v564 = vpop.f32.mrb[0].mxu0
  %v565 = vadd.f32 0.0, %v564
  %566 = vdwg.mxu0
  %v567 = vadd.f32 %v513, %v559
  %v568 = vadd.f32 %v514, %v561
  %v569 = vadd.f32 %v515, %v563
  %v570 = vadd.f32 %v516, %v565
  %v571 = vxor.u32 %v567, 2147483648
  %v572 = vxor.u32 %v569, 2147483648
  %v573 = vmul.f32 %v571, 1.442695
  %v574 = vpow.pop %v573
  %v575 = vmul.f32 %v572, 1.442695
  %v576 = vpow.pop %v575
  %v577 = vadd.f32 %v574, 1.0
  %v578 = vadd.f32 %v576, 1.0
  %v579 = vrcp.pop %v577
  %v580 = vmul.f32 1.0, %v579
  %v581 = vrcp.pop %v578
  %v582 = vmul.f32 1.0, %v581
  %v583 = vtanh.pop %v568
  %v584 = vtanh.pop %v570
  %v585 = vxor.u32 %v568, 2147483648
  %v586 = vxor.u32 %v570, 2147483648
  %v587 = vmul.f32 %v585, 1.442695
  %v588 = vpow.pop %v587
  %v589 = vmul.f32 %v586, 1.442695
  %v590 = vpow.pop %v589
  %v591 = vadd.f32 %v588, 1.0
  %v592 = vadd.f32 %v590, 1.0
  %v593 = vrcp.pop %v591
  %v594 = vmul.f32 1.0, %v593
  %v595 = vrcp.pop %v592
  %v596 = vmul.f32 1.0, %v595
  %v597 = vmul.f32 %v580, %v504
  %v598 = vmul.f32 %v582, %v505
  %v599 = vmul.f32 %v580, %v583
  %v600 = vmul.f32 %v582, %v584
  %603 = vrot.lane.b32.xlu0 %v599, 64
  %v604 = vpop.permute.xlu0 %603
  %605 = vrot.lane.b32.xlu0 %v600, 64
  %v606 = vpop.permute.xlu0 %605
  %v609 = vadd.f32 %v597, %v604
  %v610 = vadd.f32 %v598, %v606
  %v611 = vtanh.pop %v609
  %v612 = vtanh.pop %v610
  %v613 = vmul.f32 %v594, %v611
  %v614 = vmul.f32 %v596, %v612
  %s615 = scalar_lea.vmem %s0, 80
  %v616 = vld [vmem:[%s615] sm:$0xff]
  %v617 = vld [vmem:[%s615 + $0x8] sm:$0xff]
  %v618 = vunpack.c.l.bf16 %v616
  %v619 = vunpack.c.h.bf16 %v616
  %v620 = vunpack.c.l.bf16 %v617
  %v621 = vunpack.c.h.bf16 %v617
  %v622 = vpack.c.bf16 %v614, %v613
  %624 = vrot.lane.b32.xlu0 %v622, 64
  %v625 = vpop.permute.xlu0 %624
  %v627 = vsel %vm92, %v625, 0
  %629 = vmatprep.subr.bf16.mxu0 %v77
  %630 = vmatpush1.bf16.msra.mxu0 %v76
  %631 = vmatprep.subr.bf16.mxu0 %v79
  %632 = vmatpush1.bf16.msra.mxu0 %v78
  %633 = vmatprep.subr.bf16.mxu0 %v81
  %634 = vmatpush1.bf16.msra.mxu0 %v80
  %635 = vmatprep.subr.bf16.mxu0 %v83
  %636 = vmatpush1.bf16.msra.mxu0 %v82
  %637 = vmatprep.subr.bf16.mxu0 0
  %638 = vmatpush1.bf16.msra.mxu0 0
  %639 = vmatprep.subr.bf16.mxu0 0
  %640 = vmatpush1.bf16.msra.mxu0 0
  %641 = vmatprep.subr.bf16.mxu0 0
  %642 = vmatpush1.bf16.msra.mxu0 0
  %643 = vmatprep.subr.bf16.mxu0 0
  %644 = vmatpush1.bf16.msra.mxu0 0
  %645 = vmatprep.subr.bf16.mxu0 0
  %646 = vmatpush1.bf16.msra.mxu0 0
  %647 = vmatprep.subr.bf16.mxu0 0
  %648 = vmatpush1.bf16.msra.mxu0 0
  %649 = vmatprep.subr.bf16.mxu0 0
  %650 = vmatpush1.bf16.msra.mxu0 0
  %651 = vmatprep.subr.bf16.mxu0 0
  %652 = vmatpush1.bf16.msra.mxu0 0
  %653 = vmatprep.subr.bf16.mxu0 0
  %654 = vmatpush1.bf16.msra.mxu0 0
  %655 = vmatprep.subr.bf16.mxu0 0
  %656 = vmatpush1.bf16.msra.mxu0 0
  %657 = vmatprep.subr.bf16.mxu0 0
  %658 = vmatpush1.bf16.msra.mxu0 0
  %659 = vmatprep.subr.bf16.mxu0 0
  %660 = vmatpush1.bf16.msra.mxu0 0
  %661 = vmatprep.mubr.bf16.mxu0 0
  %662 = vmatmul.mubr.bf16.gmra.mrb[0].mxu0 %v627
  %v663 = vpop.f32.mrb[0].mxu0
  %v664 = vadd.f32 0.0, %v663
  %v665 = vpop.f32.mrb[0].mxu0
  %v666 = vadd.f32 0.0, %v665
  %v667 = vpop.f32.mrb[0].mxu0
  %v668 = vadd.f32 0.0, %v667
  %v669 = vpop.f32.mrb[0].mxu0
  %v670 = vadd.f32 0.0, %v669
  %671 = vdwg.mxu0
  %v672 = vadd.f32 %v618, %v664
  %v673 = vadd.f32 %v619, %v666
  %v674 = vadd.f32 %v620, %v668
  %v675 = vadd.f32 %v621, %v670
  %v676 = vxor.u32 %v672, 2147483648
  %v677 = vxor.u32 %v674, 2147483648
  %v678 = vmul.f32 %v676, 1.442695
  %v679 = vpow.pop %v678
  %v680 = vmul.f32 %v677, 1.442695
  %v681 = vpow.pop %v680
  %v682 = vadd.f32 %v679, 1.0
  %v683 = vadd.f32 %v681, 1.0
  %v684 = vrcp.pop %v682
  %v685 = vmul.f32 1.0, %v684
  %v686 = vrcp.pop %v683
  %v687 = vmul.f32 1.0, %v686
  %v688 = vtanh.pop %v673
  %v689 = vtanh.pop %v675
  %v690 = vxor.u32 %v673, 2147483648
  %v691 = vxor.u32 %v675, 2147483648
  %v692 = vmul.f32 %v690, 1.442695
  %v693 = vpow.pop %v692
  %v694 = vmul.f32 %v691, 1.442695
  %v695 = vpow.pop %v694
  %v696 = vadd.f32 %v693, 1.0
  %v697 = vadd.f32 %v695, 1.0
  %v698 = vrcp.pop %v696
  %v699 = vmul.f32 1.0, %v698
  %v700 = vrcp.pop %v697
  %v701 = vmul.f32 1.0, %v700
  %v702 = vmul.f32 %v685, %v609
  %v703 = vmul.f32 %v687, %v610
  %v704 = vmul.f32 %v685, %v688
  %v705 = vmul.f32 %v687, %v689
  %708 = vrot.lane.b32.xlu0 %v704, 64
  %v709 = vpop.permute.xlu0 %708
  %710 = vrot.lane.b32.xlu0 %v705, 64
  %v711 = vpop.permute.xlu0 %710
  %v714 = vadd.f32 %v702, %v709
  %v715 = vadd.f32 %v703, %v711
  %v716 = vtanh.pop %v714
  %v717 = vtanh.pop %v715
  %v718 = vmul.f32 %v699, %v716
  %v719 = vmul.f32 %v701, %v717
  %s720 = scalar_lea.vmem %s0, 96
  %v721 = vld [vmem:[%s720] sm:$0xff]
  %v722 = vld [vmem:[%s720 + $0x8] sm:$0xff]
  %v723 = vunpack.c.l.bf16 %v721
  %v724 = vunpack.c.h.bf16 %v721
  %v725 = vunpack.c.l.bf16 %v722
  %v726 = vunpack.c.h.bf16 %v722
  %v727 = vpack.c.bf16 %v719, %v718
  %729 = vrot.lane.b32.xlu0 %v727, 64
  %v730 = vpop.permute.xlu0 %729
  %v732 = vsel %vm92, %v730, 0
  %734 = vmatprep.subr.bf16.mxu0 %v77
  %735 = vmatpush1.bf16.msra.mxu0 %v76
  %736 = vmatprep.subr.bf16.mxu0 %v79
  %737 = vmatpush1.bf16.msra.mxu0 %v78
  %738 = vmatprep.subr.bf16.mxu0 %v81
  %739 = vmatpush1.bf16.msra.mxu0 %v80
  %740 = vmatprep.subr.bf16.mxu0 %v83
  %741 = vmatpush1.bf16.msra.mxu0 %v82
  %742 = vmatprep.subr.bf16.mxu0 0
  %743 = vmatpush1.bf16.msra.mxu0 0
  %744 = vmatprep.subr.bf16.mxu0 0
  %745 = vmatpush1.bf16.msra.mxu0 0
  %746 = vmatprep.subr.bf16.mxu0 0
  %747 = vmatpush1.bf16.msra.mxu0 0
  %748 = vmatprep.subr.bf16.mxu0 0
  %749 = vmatpush1.bf16.msra.mxu0 0
  %750 = vmatprep.subr.bf16.mxu0 0
  %751 = vmatpush1.bf16.msra.mxu0 0
  %752 = vmatprep.subr.bf16.mxu0 0
  %753 = vmatpush1.bf16.msra.mxu0 0
  %754 = vmatprep.subr.bf16.mxu0 0
  %755 = vmatpush1.bf16.msra.mxu0 0
  %756 = vmatprep.subr.bf16.mxu0 0
  %757 = vmatpush1.bf16.msra.mxu0 0
  %758 = vmatprep.subr.bf16.mxu0 0
  %759 = vmatpush1.bf16.msra.mxu0 0
  %760 = vmatprep.subr.bf16.mxu0 0
  %761 = vmatpush1.bf16.msra.mxu0 0
  %762 = vmatprep.subr.bf16.mxu0 0
  %763 = vmatpush1.bf16.msra.mxu0 0
  %764 = vmatprep.subr.bf16.mxu0 0
  %765 = vmatpush1.bf16.msra.mxu0 0
  %766 = vmatprep.mubr.bf16.mxu0 0
  %767 = vmatmul.mubr.bf16.gmra.mrb[0].mxu0 %v732
  %v768 = vpop.f32.mrb[0].mxu0
  %v769 = vadd.f32 0.0, %v768
  %v770 = vpop.f32.mrb[0].mxu0
  %v771 = vadd.f32 0.0, %v770
  %v772 = vpop.f32.mrb[0].mxu0
  %v773 = vadd.f32 0.0, %v772
  %v774 = vpop.f32.mrb[0].mxu0
  %v775 = vadd.f32 0.0, %v774
  %776 = vdwg.mxu0
  %v777 = vadd.f32 %v723, %v769
  %v778 = vadd.f32 %v724, %v771
  %v779 = vadd.f32 %v725, %v773
  %v780 = vadd.f32 %v726, %v775
  %v781 = vxor.u32 %v777, 2147483648
  %v782 = vxor.u32 %v779, 2147483648
  %v783 = vmul.f32 %v781, 1.442695
  %v784 = vpow.pop %v783
  %v785 = vmul.f32 %v782, 1.442695
  %v786 = vpow.pop %v785
  %v787 = vadd.f32 %v784, 1.0
  %v788 = vadd.f32 %v786, 1.0
  %v789 = vrcp.pop %v787
  %v790 = vmul.f32 1.0, %v789
  %v791 = vrcp.pop %v788
  %v792 = vmul.f32 1.0, %v791
  %v793 = vtanh.pop %v778
  %v794 = vtanh.pop %v780
  %v795 = vxor.u32 %v778, 2147483648
  %v796 = vxor.u32 %v780, 2147483648
  %v797 = vmul.f32 %v795, 1.442695
  %v798 = vpow.pop %v797
  %v799 = vmul.f32 %v796, 1.442695
  %v800 = vpow.pop %v799
  %v801 = vadd.f32 %v798, 1.0
  %v802 = vadd.f32 %v800, 1.0
  %v803 = vrcp.pop %v801
  %v804 = vmul.f32 1.0, %v803
  %v805 = vrcp.pop %v802
  %v806 = vmul.f32 1.0, %v805
  %v807 = vmul.f32 %v790, %v714
  %v808 = vmul.f32 %v792, %v715
  %v809 = vmul.f32 %v790, %v793
  %v810 = vmul.f32 %v792, %v794
  %813 = vrot.lane.b32.xlu0 %v809, 64
  %v814 = vpop.permute.xlu0 %813
  %815 = vrot.lane.b32.xlu0 %v810, 64
  %v816 = vpop.permute.xlu0 %815
  %v819 = vadd.f32 %v807, %v814
  %v820 = vadd.f32 %v808, %v816
  %v821 = vtanh.pop %v819
  %v822 = vtanh.pop %v820
  %v823 = vmul.f32 %v804, %v821
  %v824 = vmul.f32 %v806, %v822
  %s825 = scalar_lea.vmem %s0, 112
  %v826 = vld [vmem:[%s825] sm:$0xff]
  %v827 = vld [vmem:[%s825 + $0x8] sm:$0xff]
  %v828 = vunpack.c.l.bf16 %v826
  %v829 = vunpack.c.h.bf16 %v826
  %v830 = vunpack.c.l.bf16 %v827
  %v831 = vunpack.c.h.bf16 %v827
  %v832 = vpack.c.bf16 %v824, %v823
  %834 = vrot.lane.b32.xlu0 %v832, 64
  %v835 = vpop.permute.xlu0 %834
  %v837 = vsel %vm92, %v835, 0
  %839 = vmatprep.subr.bf16.mxu0 %v77
  %840 = vmatpush1.bf16.msra.mxu0 %v76
  %841 = vmatprep.subr.bf16.mxu0 %v79
  %842 = vmatpush1.bf16.msra.mxu0 %v78
  %843 = vmatprep.subr.bf16.mxu0 %v81
  %844 = vmatpush1.bf16.msra.mxu0 %v80
  %845 = vmatprep.subr.bf16.mxu0 %v83
  %846 = vmatpush1.bf16.msra.mxu0 %v82
  %847 = vmatprep.subr.bf16.mxu0 0
  %848 = vmatpush1.bf16.msra.mxu0 0
  %849 = vmatprep.subr.bf16.mxu0 0
  %850 = vmatpush1.bf16.msra.mxu0 0
  %851 = vmatprep.subr.bf16.mxu0 0
  %852 = vmatpush1.bf16.msra.mxu0 0
  %853 = vmatprep.subr.bf16.mxu0 0
  %854 = vmatpush1.bf16.msra.mxu0 0
  %855 = vmatprep.subr.bf16.mxu0 0
  %856 = vmatpush1.bf16.msra.mxu0 0
  %857 = vmatprep.subr.bf16.mxu0 0
  %858 = vmatpush1.bf16.msra.mxu0 0
  %859 = vmatprep.subr.bf16.mxu0 0
  %860 = vmatpush1.bf16.msra.mxu0 0
  %861 = vmatprep.subr.bf16.mxu0 0
  %862 = vmatpush1.bf16.msra.mxu0 0
  %863 = vmatprep.subr.bf16.mxu0 0
  %864 = vmatpush1.bf16.msra.mxu0 0
  %865 = vmatprep.subr.bf16.mxu0 0
  %866 = vmatpush1.bf16.msra.mxu0 0
  %867 = vmatprep.subr.bf16.mxu0 0
  %868 = vmatpush1.bf16.msra.mxu0 0
  %869 = vmatprep.subr.bf16.mxu0 0
  %870 = vmatpush1.bf16.msra.mxu0 0
  %871 = vmatprep.mubr.bf16.mxu0 0
  %872 = vmatmul.mubr.bf16.gmra.mrb[0].mxu0 %v837
  %v873 = vpop.f32.mrb[0].mxu0
  %v874 = vadd.f32 0.0, %v873
  %v875 = vpop.f32.mrb[0].mxu0
  %v876 = vadd.f32 0.0, %v875
  %v877 = vpop.f32.mrb[0].mxu0
  %v878 = vadd.f32 0.0, %v877
  %v879 = vpop.f32.mrb[0].mxu0
  %v880 = vadd.f32 0.0, %v879
  %881 = vdwg.mxu0
  %v882 = vadd.f32 %v828, %v874
  %v883 = vadd.f32 %v829, %v876
  %v884 = vadd.f32 %v830, %v878
  %v885 = vadd.f32 %v831, %v880
  %v886 = vxor.u32 %v882, 2147483648
  %v887 = vxor.u32 %v884, 2147483648
  %v888 = vmul.f32 %v886, 1.442695
  %v889 = vpow.pop %v888
  %v890 = vmul.f32 %v887, 1.442695
  %v891 = vpow.pop %v890
  %v892 = vadd.f32 %v889, 1.0
  %v893 = vadd.f32 %v891, 1.0
  %v894 = vrcp.pop %v892
  %v895 = vmul.f32 1.0, %v894
  %v896 = vrcp.pop %v893
  %v897 = vmul.f32 1.0, %v896
  %v898 = vtanh.pop %v883
  %v899 = vtanh.pop %v885
  %v900 = vxor.u32 %v883, 2147483648
  %v901 = vxor.u32 %v885, 2147483648
  %v902 = vmul.f32 %v900, 1.442695
  %v903 = vpow.pop %v902
  %v904 = vmul.f32 %v901, 1.442695
  %v905 = vpow.pop %v904
  %v906 = vadd.f32 %v903, 1.0
  %v907 = vadd.f32 %v905, 1.0
  %v908 = vrcp.pop %v906
  %v909 = vmul.f32 1.0, %v908
  %v910 = vrcp.pop %v907
  %v911 = vmul.f32 1.0, %v910
  %v912 = vmul.f32 %v895, %v819
  %v913 = vmul.f32 %v897, %v820
  %v914 = vmul.f32 %v895, %v898
  %v915 = vmul.f32 %v897, %v899
  %918 = vrot.lane.b32.xlu0 %v914, 64
  %v919 = vpop.permute.xlu0 %918
  %920 = vrot.lane.b32.xlu0 %v915, 64
  %v921 = vpop.permute.xlu0 %920
  %v924 = vadd.f32 %v912, %v919
  %v925 = vadd.f32 %v913, %v921
  %v926 = vtanh.pop %v924
  %v927 = vtanh.pop %v925
  %v928 = vmul.f32 %v909, %v926
  %v929 = vmul.f32 %v911, %v927
  %932 = vrot.lane.b32.xlu0 %v928, 64
  %v933 = vpop.permute.xlu0 %932
  %934 = vrot.lane.b32.xlu0 %v929, 64
  %v935 = vpop.permute.xlu0 %934
  %938 = vst.msk [vmem:[#allocation2] sm:$0xff] %vm92, %v933
  %939 = vst.msk [vmem:[#allocation2 + $0x8] sm:$0xff] %vm92, %v935
  %942 = vrot.lane.b32.xlu0 %v924, 64
  %v943 = vpop.permute.xlu0 %942
  %944 = vrot.lane.b32.xlu0 %v925, 64
  %v945 = vpop.permute.xlu0 %944
  %948 = vst.msk [vmem:[#allocation3] sm:$0xff] %vm92, %v943
  %949 = vst.msk [vmem:[#allocation3 + $0x8] sm:$0xff] %vm92, %v945
  // Predicated region
  $region30: #{lstm_model_forward.1} parent=0 // pred_check
    %p950 = pneg %p24
  $region31: #{lstm_model_forward.1} parent=0 // pred_check_branch
    %952 = sbr.rel (%p950) target = $region33
  $region32: #{lstm_model_forward.1} parent=0 // pred_region
    %v953 = vld [vmem:[%s2] sm:$0xff]
    %v954 = vld [vmem:[%s2 + $0x8] sm:$0xff]
    %v955 = vld [vmem:[%s2 + $0x10] sm:$0xff]
    %v956 = vld [vmem:[%s2 + $0x18] sm:$0xff]
    %v957 = vld [vmem:[%s2 + $0x20] sm:$0xff]
    %v958 = vld [vmem:[%s2 + $0x28] sm:$0xff]
    %v959 = vld [vmem:[%s2 + $0x30] sm:$0xff]
    %v960 = vld [vmem:[%s2 + $0x38] sm:$0xff]
    %v961 = vld [vmem:[%s3] sm:$0x1]
    %v963 = vlaneseq
    %v964 = vshrl.u32 %v963, 7
    %v965 = vsub.s32 0, %v964
    %v966 = vrot.slane %v961, %v965
    %v968 = vsel %vm92, %v933, 0
    %v970 = vsel %vm92, %v935, 0
    %972 = vmatprep.subr.mxu0 0.0
    %973 = vmatpush1.msra.mxu0 %v953
    %974 = vmatprep.subr.mxu0 0.0
    %975 = vmatpush1.msra.mxu0 %v954
    %976 = vmatprep.subr.mxu0 0.0
    %977 = vmatpush1.msra.mxu0 %v955
    %978 = vmatprep.subr.mxu0 0.0
    %979 = vmatpush1.msra.mxu0 %v956
    %980 = vmatprep.subr.mxu0 0.0
    %981 = vmatpush1.msra.mxu0 %v957
    %982 = vmatprep.subr.mxu0 0.0
    %983 = vmatpush1.msra.mxu0 %v958
    %984 = vmatprep.subr.mxu0 0.0
    %985 = vmatpush1.msra.mxu0 %v959
    %986 = vmatprep.subr.mxu0 0.0
    %987 = vmatpush1.msra.mxu0 %v960
    %988 = vmatprep.subr.mxu0 0.0
    %989 = vmatpush1.msra.mxu0 0.0
    %990 = vmatprep.subr.mxu0 0.0
    %991 = vmatpush1.msra.mxu0 0.0
    %992 = vmatprep.subr.mxu0 0.0
    %993 = vmatpush1.msra.mxu0 0.0
    %994 = vmatprep.subr.mxu0 0.0
    %995 = vmatpush1.msra.mxu0 0.0
    %996 = vmatprep.subr.mxu0 0.0
    %997 = vmatpush1.msra.mxu0 0.0
    %998 = vmatprep.subr.mxu0 0.0
    %999 = vmatpush1.msra.mxu0 0.0
    %1000 = vmatprep.subr.mxu0 0.0
    %1001 = vmatpush1.msra.mxu0 0.0
    %1002 = vmatprep.subr.mxu0 0.0
    %1003 = vmatpush1.msra.mxu0 0.0
    %1004 = vmatprep.subr.mxu0 0.0
    %1005 = vmatpush1.msra.mxu0 0.0
    %1006 = vmatprep.subr.mxu0 0.0
    %1007 = vmatpush1.msra.mxu0 0.0
    %1008 = vmatprep.subr.mxu0 0.0
    %1009 = vmatpush1.msra.mxu0 0.0
    %1010 = vmatprep.subr.mxu0 0.0
    %1011 = vmatpush1.msra.mxu0 0.0
    %1012 = vmatprep.subr.mxu0 0.0
    %1013 = vmatpush1.msra.mxu0 0.0
    %1014 = vmatprep.subr.mxu0 0.0
    %1015 = vmatpush1.msra.mxu0 0.0
    %1016 = vmatprep.subr.mxu0 0.0
    %1017 = vmatpush1.msra.mxu0 0.0
    %1018 = vmatprep.subr.mxu0 0.0
    %1019 = vmatpush1.msra.mxu0 0.0
    %1020 = vmatprep.subr.mxu0 0.0
    %1021 = vmatpush1.msra.mxu0 0.0
    %1022 = vmatprep.subr.mxu0 0.0
    %1023 = vmatpush1.msra.mxu0 0.0
    %1024 = vmatprep.subr.mxu0 0.0
    %1025 = vmatpush1.msra.mxu0 0.0
    %1026 = vmatprep.subr.mxu0 0.0
    %1027 = vmatpush1.msra.mxu0 0.0
    %1028 = vmatprep.subr.mxu0 0.0
    %1029 = vmatpush1.msra.mxu0 0.0
    %1030 = vmatprep.subr.mxu0 0.0
    %1031 = vmatpush1.msra.mxu0 0.0
    %1032 = vmatprep.subr.mxu0 0.0
    %1033 = vmatpush1.msra.mxu0 0.0
    %1034 = vmatprep.subr.mxu0 0.0
    %1035 = vmatpush1.msra.mxu0 0.0
    %1036 = vmatprep.mubr.f32.mxu0 0.0
    %1037 = vmatmul.mubr.f32.gmra.mrb[0].mxu0 %v968
    %v1038 = vpop.f32.mrb[0].mxu0
    %v1039 = vadd.f32 %v966, %v1038
    %v1040 = vpop.f32.mrb[0].mxu0
    %1041 = vmatprep.mubr.f32.mxu0 0.0
    %1042 = vmatmul.mubr.f32.gmra.mrb[0].mxu0 %v970
    %v1043 = vpop.f32.mrb[0].mxu0
    %v1044 = vadd.f32 %v966, %v1043
    %v1045 = vpop.f32.mrb[0].mxu0
    %1046 = vdwg.mxu0
    %v1047 = vmax.f32 %v1039, 0.0
    %v1048 = vmax.f32 %v1044, 0.0
    %v1049 = vld [vmem:[%s4] sm:$0xff]
    %v1050 = vld [vmem:[%s4 + $0x8] sm:$0xff]
    %v1051 = vld [vmem:[%s4 + $0x10] sm:$0xff]
    %v1052 = vld [vmem:[%s4 + $0x18] sm:$0xff]
    %v1053 = vld [vmem:[%s5] sm:$0x1]
    %v1055 = vlaneseq
    %v1056 = vshrl.u32 %v1055, 7
    %v1057 = vsub.s32 0, %v1056
    %v1058 = vrot.slane %v1053, %v1057
    %vm1060 = vcmask 261120
    %v1062 = vsel %vm1060, %v1047, 0
    %v1065 = vsel %vm1060, %v1048, 0
    %1067 = vmatprep.subr.mxu0 0.0
    %1068 = vmatpush1.msra.mxu0 %v1049
    %1069 = vmatprep.subr.mxu0 0.0
    %1070 = vmatpush1.msra.mxu0 %v1050
    %1071 = vmatprep.subr.mxu0 0.0
    %1072 = vmatpush1.msra.mxu0 %v1051
    %1073 = vmatprep.subr.mxu0 0.0
    %1074 = vmatpush1.msra.mxu0 %v1052
    %1075 = vmatprep.subr.mxu0 0.0
    %1076 = vmatpush1.msra.mxu0 0.0
    %1077 = vmatprep.subr.mxu0 0.0
    %1078 = vmatpush1.msra.mxu0 0.0
    %1079 = vmatprep.subr.mxu0 0.0
    %1080 = vmatpush1.msra.mxu0 0.0
    %1081 = vmatprep.subr.mxu0 0.0
    %1082 = vmatpush1.msra.mxu0 0.0
    %1083 = vmatprep.subr.mxu0 0.0
    %1084 = vmatpush1.msra.mxu0 0.0
    %1085 = vmatprep.subr.mxu0 0.0
    %1086 = vmatpush1.msra.mxu0 0.0
    %1087 = vmatprep.subr.mxu0 0.0
    %1088 = vmatpush1.msra.mxu0 0.0
    %1089 = vmatprep.subr.mxu0 0.0
    %1090 = vmatpush1.msra.mxu0 0.0
    %1091 = vmatprep.subr.mxu0 0.0
    %1092 = vmatpush1.msra.mxu0 0.0
    %1093 = vmatprep.subr.mxu0 0.0
    %1094 = vmatpush1.msra.mxu0 0.0
    %1095 = vmatprep.subr.mxu0 0.0
    %1096 = vmatpush1.msra.mxu0 0.0
    %1097 = vmatprep.subr.mxu0 0.0
    %1098 = vmatpush1.msra.mxu0 0.0
    %1099 = vmatprep.subr.mxu0 0.0
    %1100 = vmatpush1.msra.mxu0 0.0
    %1101 = vmatprep.subr.mxu0 0.0
    %1102 = vmatpush1.msra.mxu0 0.0
    %1103 = vmatprep.subr.mxu0 0.0
    %1104 = vmatpush1.msra.mxu0 0.0
    %1105 = vmatprep.subr.mxu0 0.0
    %1106 = vmatpush1.msra.mxu0 0.0
    %1107 = vmatprep.subr.mxu0 0.0
    %1108 = vmatpush1.msra.mxu0 0.0
    %1109 = vmatprep.subr.mxu0 0.0
    %1110 = vmatpush1.msra.mxu0 0.0
    %1111 = vmatprep.subr.mxu0 0.0
    %1112 = vmatpush1.msra.mxu0 0.0
    %1113 = vmatprep.subr.mxu0 0.0
    %1114 = vmatpush1.msra.mxu0 0.0
    %1115 = vmatprep.subr.mxu0 0.0
    %1116 = vmatpush1.msra.mxu0 0.0
    %1117 = vmatprep.subr.mxu0 0.0
    %1118 = vmatpush1.msra.mxu0 0.0
    %1119 = vmatprep.subr.mxu0 0.0
    %1120 = vmatpush1.msra.mxu0 0.0
    %1121 = vmatprep.subr.mxu0 0.0
    %1122 = vmatpush1.msra.mxu0 0.0
    %1123 = vmatprep.subr.mxu0 0.0
    %1124 = vmatpush1.msra.mxu0 0.0
    %1125 = vmatprep.subr.mxu0 0.0
    %1126 = vmatpush1.msra.mxu0 0.0
    %1127 = vmatprep.subr.mxu0 0.0
    %1128 = vmatpush1.msra.mxu0 0.0
    %1129 = vmatprep.subr.mxu0 0.0
    %1130 = vmatpush1.msra.mxu0 0.0
    %1131 = vmatprep.mubr.f32.mxu0 0.0
    %1132 = vmatmul.mubr.f32.gmra.mrb[0].mxu0 %v1062
    %v1133 = vpop.f32.mrb[0].mxu0
    %v1134 = vadd.f32 %v1058, %v1133
    %v1135 = vpop.f32.mrb[0].mxu0
    %1136 = vmatprep.mubr.f32.mxu0 0.0
    %1137 = vmatmul.mubr.f32.gmra.mrb[0].mxu0 %v1065
    %v1138 = vpop.f32.mrb[0].mxu0
    %v1139 = vadd.f32 %v1058, %v1138
    %v1140 = vpop.f32.mrb[0].mxu0
    %1141 = vdwg.mxu0
    %1142 = vst [vmem:[%s6] sm:$0xff] %v1134
    %1143 = vst [vmem:[%s6 + $0x8] sm:$0xff] %v1139
  $region33: #{lstm_model_forward.1} parent=0 // pred_fallthru
    _
  // Predicated region
  $region34: #{lstm_model_forward.1} parent=0 // pred_check
    _
  $region35: #{lstm_model_forward.1} parent=0 // pred_check_branch
    %1145 = sbr.rel (0) target = $region37
  $region36: #{lstm_model_forward.1} parent=0 // pred_region
    _
  $region37: #{lstm_model_forward.1} parent=0 // pred_fallthru
    _
  // Predicated region
  $region38: #{lstm_model_forward.1} parent=0 // pred_check
    _
  $region39: #{lstm_model_forward.1} parent=0 // pred_check_branch
    %1147 = sbr.rel (0) target = $region41
  $region40: #{lstm_model_forward.1} parent=0 // pred_region
    _
  $region41: #{lstm_model_forward.1} parent=0 // pred_fallthru
    _

</llo_original>
